<compile_context>
chip_gen: v7x
topology: tpu7x:2x2x1
jax: 0.10.0
libtpu: 0.0.40
codegen_flags: <defaults>
</compile_context>

<pallas_src>
import jax
import jax.numpy as jnp
from jax.experimental import pallas as pl
from jax.experimental.pallas import tpu as pltpu


def _round_up(x, m):
    return (x + m - 1) // m * m


def _pick_time_chunk(seq, cap=8):
    """Largest divisor of seq that is <= cap.  Time must NOT be zero-padded
    (extra zero-input steps would still update h via the bias/recurrence)."""
    for tc in range(min(seq, cap), 0, -1):
        if seq % tc == 0:
            return tc
    return 1


def _sigmoid_via_tanh(x):
    # sigmoid(x) == 0.5*(tanh(0.5*x)+1): single EUP op + cheap VALU instead of
    # exp + add + real divide -> shorter latency chain in the serial step.
    return 0.5 * (jnp.tanh(0.5 * x) + 1.0)


def lstm_net_kernel(x_ref, wih_ref, whh_ref, b_ref, wl_ref, bl_ref,
                    out_ref, gx_ref, h_ref, c_ref):
    """One (batch-block, time-chunk) grid step.

    x_ref  : (Tc, Bblk, Ep) bf16   embedded inputs for this chunk
    wih_ref: (Ep, 4Hp)      bf16   input->gates weight (resident, const index)
    whh_ref: (Hp, 4Hp)      bf16   hidden->gates weight (resident)
    b_ref  : (1, 4Hp)       f32    fused bias b_ih + b_hh
    wl_ref : (Hp, Op)       bf16   final linear weight
    bl_ref : (1, Op)        f32    final linear bias
    out_ref: (Bblk, Op)     f32    sigmoid(linear(h_n)); written at last chunk
    gx_ref : (Tc*Bblk, 4Hp) f32    scratch: chunk input projection
    h_ref, c_ref: (Bblk, Hp) f32   scratch: recurrent state, persists over t
    """
    t = pl.program_id(1)
    nt = pl.num_programs(1)
    Tc, Bblk, Ep = x_ref.shape
    Hp = whh_ref.shape[0]

    @pl.when(t == 0)
    def _():
        h_ref[...] = jnp.zeros_like(h_ref)
        c_ref[...] = jnp.zeros_like(c_ref)

    # ---- Phase 1 (no sequential dependency): input projection for the whole
    # chunk as ONE MXU matmul (M = Tc*Bblk), bias fused, f32 accumulate.
    # (Tc, Bblk, Ep) -> (Tc*Bblk, Ep) is a layout-preserving merge
    # (Bblk % 8 == 0, Ep % 128 == 0).
    x2 = x_ref[...].reshape(Tc * Bblk, Ep)
    gx_ref[...] = (jnp.dot(x2, wih_ref[...],
                           preferred_element_type=jnp.float32) + b_ref[...])

    # ---- Phase 2: serial recurrence over the chunk; only h @ W_hh per step.
    # W_hh is read from VMEM inside the step so the unrolled loop does not
    # carry a ~32-vreg weight live range (spill risk).
    def step(s, carry):
        h, c = carry                                   # f32 (Bblk, Hp)
        row = pl.multiple_of(s * Bblk, 8)              # sublane-aligned offset
        gates = gx_ref[pl.ds(row, Bblk), :] + jnp.dot(
            h.astype(whh_ref.dtype), whh_ref[...],
            preferred_element_type=jnp.float32)
        # PyTorch gate order i, f, g, o; each gate sits in its own
        # 128-lane-aligned Hp block -> whole-vreg slices, no relayout.
        i_g = _sigmoid_via_tanh(gates[:, 0 * Hp:1 * Hp])
        f_g = _sigmoid_via_tanh(gates[:, 1 * Hp:2 * Hp])
        g_g = jnp.tanh(gates[:, 2 * Hp:3 * Hp])
        o_g = _sigmoid_via_tanh(gates[:, 3 * Hp:4 * Hp])
        c_new = f_g * c + i_g * g_g
        h_new = o_g * jnp.tanh(c_new)
        return h_new, c_new

    # Bounded unroll: Tc <= 8 by construction.
    h, c = jax.lax.fori_loop(0, Tc, step, (h_ref[...], c_ref[...]),
                             unroll=True)
    h_ref[...] = h
    c_ref[...] = c

    # ---- Fused final Linear + sigmoid on h_n (== hidden1.squeeze(0)).
    @pl.when(t == nt - 1)
    def _():
        logits = jnp.dot(h.astype(wl_ref.dtype), wl_ref[...],
                         preferred_element_type=jnp.float32) + bl_ref[...]
        out_ref[...] = _sigmoid_via_tanh(logits)


def pack_params(params, compute_dtype=jnp.bfloat16):
    """Repack PyTorch-layout weights into padded, lane-aligned kernel layout.
    The embedding table is padded/cast here so per-call glue does no padding
    of the feature dimension."""
    emb = params["embedding"]                            # (V, E)
    w_ih, w_hh = params["w_ih"], params["w_hh"]          # (4H,E), (4H,H)
    b = params["b_ih"] + params["b_hh"]                  # (4H,)
    w_lin, b_lin = params["w_lin"], params["b_lin"]      # (O,H), (O,)
    V, E = emb.shape
    H = w_hh.shape[1]
    O = w_lin.shape[0]
    Ep, Hp, Op = _round_up(E, 128), _round_up(H, 128), _round_up(O, 128)

    emb_p = jnp.zeros((V, Ep), compute_dtype).at[:, :E].set(
        emb.astype(compute_dtype))

    wih_p = jnp.zeros((Ep, 4 * Hp), compute_dtype)
    whh_p = jnp.zeros((Hp, 4 * Hp), compute_dtype)
    b_p = jnp.zeros((1, 4 * Hp), jnp.float32)
    for k in range(4):  # gate order i, f, g, o — each in its own Hp block
        wih_p = wih_p.at[:E, k * Hp:k * Hp + H].set(
            w_ih[k * H:(k + 1) * H, :].T.astype(compute_dtype))
        whh_p = whh_p.at[:H, k * Hp:k * Hp + H].set(
            w_hh[k * H:(k + 1) * H, :].T.astype(compute_dtype))
        b_p = b_p.at[0, k * Hp:k * Hp + H].set(b[k * H:(k + 1) * H])

    wl_p = jnp.zeros((Hp, Op), compute_dtype).at[:H, :O].set(
        w_lin.T.astype(compute_dtype))
    bl_p = jnp.zeros((1, Op), jnp.float32).at[0, :O].set(b_lin)
    return {"emb": emb_p, "wih": wih_p, "whh": whh_p, "b": b_p,
            "wl": wl_p, "bl": bl_p, "out_dim": O}


def lstm_net_forward(inp, packed):
    """inp: (seq, batch) int32 token indices. Returns (batch,) float32."""
    seq, B = inp.shape
    Ep = packed["wih"].shape[0]
    Hp = packed["whh"].shape[0]
    Op = packed["wl"].shape[1]
    O = packed["out_dim"]

    Bblk = min(_round_up(B, 8), 128)     # rows per batch block (sublane-mult)
    Bp = _round_up(B, Bblk)
    nb = Bp // Bblk
    Tc = _pick_time_chunk(seq)
    nt = seq // Tc

    # Glue: table is pre-padded/pre-cast, so the gather is already lane
    # aligned; a single jnp.pad handles the batch pad.
    x = packed["emb"][inp]                               # (seq, B, Ep) bf16
    if Bp != B:
        x = jnp.pad(x, ((0, 0), (0, Bp - B), (0, 0)))    # (seq, Bp, Ep)
    # TODO(synk): fuse the embedding gather into the kernel via
    #             PrefetchScalarGridSpec + row-gather index_map.

    out = pl.pallas_call(
        lstm_net_kernel,
        out_shape=jax.ShapeDtypeStruct((Bp, Op), jnp.float32),
        grid_spec=pltpu.PrefetchScalarGridSpec(
            num_scalar_prefetch=0,
            grid=(nb, nt),
            in_specs=[
                pl.BlockSpec((Tc, Bblk, Ep), lambda b, t: (t, b, 0)),
                pl.BlockSpec((Ep, 4 * Hp), lambda b, t: (0, 0)),
                pl.BlockSpec((Hp, 4 * Hp), lambda b, t: (0, 0)),
                pl.BlockSpec((1, 4 * Hp), lambda b, t: (0, 0)),
                pl.BlockSpec((Hp, Op), lambda b, t: (0, 0)),
                pl.BlockSpec((1, Op), lambda b, t: (0, 0)),
            ],
            out_specs=pl.BlockSpec((Bblk, Op), lambda b, t: (b, 0)),
            scratch_shapes=[
                pltpu.VMEM((Tc * Bblk, 4 * Hp), jnp.float32),   # gx chunk
                pltpu.VMEM((Bblk, Hp), jnp.float32),            # h carry
                pltpu.VMEM((Bblk, Hp), jnp.float32),            # c carry
            ],
        ),
        compiler_params=pltpu.CompilerParams(
            dimension_semantics=("parallel", "arbitrary")),
    )(x, packed["wih"], packed["whh"], packed["b"], packed["wl"],
      packed["bl"])

    return out[:B, :O].squeeze(-1)             # drop padding, .squeeze(-1)


def lstm_net_reference(inp, params):
    """Pure-JAX f32 reference matching PyTorch nn.LSTM semantics."""
    emb = params["embedding"]
    w_ih, w_hh = params["w_ih"], params["w_hh"]
    b = params["b_ih"] + params["b_hh"]
    w_lin, b_lin = params["w_lin"], params["b_lin"]
    H = w_hh.shape[1]
    B = inp.shape[1]
    x = emb[inp]                                             # (seq, B, E)

    def step(carry, x_t):
        h, c = carry
        g = x_t @ w_ih.T + h @ w_hh.T + b
        i = jax.nn.sigmoid(g[:, 0 * H:1 * H])
        f = jax.nn.sigmoid(g[:, 1 * H:2 * H])
        gg = jnp.tanh(g[:, 2 * H:3 * H])
        o = jax.nn.sigmoid(g[:, 3 * H:4 * H])
        c = f * c + i * gg
        h = o * jnp.tanh(c)
        return (h, c), None

    init = (jnp.zeros((B, H), jnp.float32), jnp.zeros((B, H), jnp.float32))
    (h_n, _), _ = jax.lax.scan(step, init, x)
    return jax.nn.sigmoid(h_n @ w_lin.T + b_lin).squeeze(-1)


def init_params(key, vocab, emb_dim, hidden_dim, output_dim):
    """Deterministic synthetic parameters (PyTorch-like uniform init)."""
    k = jax.random.split(key, 7)
    bound = 1.0 / jnp.sqrt(hidden_dim)
    return {
        "embedding": jax.random.normal(k[0], (vocab, emb_dim), jnp.float32),
        "w_ih": jax.random.uniform(k[1], (4 * hidden_dim, emb_dim),
                                   jnp.float32, -bound, bound),
        "w_hh": jax.random.uniform(k[2], (4 * hidden_dim, hidden_dim),
                                   jnp.float32, -bound, bound),
        "b_ih": jax.random.uniform(k[3], (4 * hidden_dim,),
                                   jnp.float32, -bound, bound),
        "b_hh": jax.random.uniform(k[4], (4 * hidden_dim,),
                                   jnp.float32, -bound, bound),
        "w_lin": jax.random.uniform(k[5], (output_dim, hidden_dim),
                                    jnp.float32, -bound, bound),
        "b_lin": jax.random.uniform(k[6], (output_dim,),
                                    jnp.float32, -bound, bound),
    }


if __name__ == "__main__":
    VOCAB, EMB, HIDDEN, OUT = 50, 16, 32, 1
    SEQ, BATCH = 8, 4

    key = jax.random.PRNGKey(0)
    pkey, ikey = jax.random.split(key)
    params = init_params(pkey, VOCAB, EMB, HIDDEN, OUT)
    packed = pack_params(params)

    # (seq, batch) integer token indices, as nn.LSTM (batch_first=False) expects.
    inp = jax.random.randint(ikey, (SEQ, BATCH), 0, VOCAB, dtype=jnp.int32)

    y = lstm_net_forward(inp, packed)
    y = jax.block_until_ready(y)
    assert y.shape == (BATCH,)
    assert bool(jnp.all(jnp.isfinite(y)))

    # Correctness vs. pure-JAX f32 reference (bf16 weights -> loose tolerance).
    y_ref = lstm_net_reference(inp, params)
    assert jnp.allclose(y, y_ref, atol=2e-2, rtol=2e-2), (y, y_ref)

    print("KERNEL_OK")
</pallas_src>

<mosaic_0001>
module attributes {stable_mosaic.version = 11 : i64} {
  func.func @lstm_net_kernel(%arg0: i32, %arg1: i32, %arg2: memref<8x8x128xbf16, #tpu.memory_space<vmem>>, %arg3: memref<128x512xbf16, #tpu.memory_space<vmem>>, %arg4: memref<128x512xbf16, #tpu.memory_space<vmem>>, %arg5: memref<1x512xf32, #tpu.memory_space<vmem>>, %arg6: memref<128x128xbf16, #tpu.memory_space<vmem>>, %arg7: memref<1x128xf32, #tpu.memory_space<vmem>>, %arg8: memref<8x128xf32, #tpu.memory_space<vmem>>, %arg9: memref<64x512xf32, #tpu.memory_space<vmem>>, %arg10: memref<8x128xf32, #tpu.memory_space<vmem>>, %arg11: memref<8x128xf32, #tpu.memory_space<vmem>>) attributes {dimension_semantics = [#tpu.dimension_semantics<parallel>, #tpu.dimension_semantics<arbitrary>], iteration_bounds = array<i64: 1, 1>, scalar_prefetch = 0 : i64, scratch_operands = 3 : i64, tpu.core_type = #tpu.core_type<tc>, window_params = [{transform_indices = @transform_0, window_bounds = array<i64: 8, 8, 128>}, {pipeline_mode = #tpu.pipeline_mode<synchronous>, transform_indices = @transform_1, window_bounds = array<i64: 128, 512>}, {pipeline_mode = #tpu.pipeline_mode<synchronous>, transform_indices = @transform_2, window_bounds = array<i64: 128, 512>}, {pipeline_mode = #tpu.pipeline_mode<synchronous>, transform_indices = @transform_3, window_bounds = array<i64: 1, 512>}, {pipeline_mode = #tpu.pipeline_mode<synchronous>, transform_indices = @transform_4, window_bounds = array<i64: 128, 128>}, {pipeline_mode = #tpu.pipeline_mode<synchronous>, transform_indices = @transform_5, window_bounds = array<i64: 1, 128>}, {transform_indices = @transform_6, window_bounds = array<i64: 8, 128>}]} {
    %c0_i32 = arith.constant 0 : i32
    %0 = arith.cmpi eq, %arg1, %c0_i32 : i32
    %1 = arith.extui %0 : i1 to i32
    %c0_i32_0 = arith.constant 0 : i32
    %2 = arith.cmpi ne, %1, %c0_i32_0 : i32
    scf.if %2 {
      %cst_132 = arith.constant 0.000000e+00 : f32
      %330 = vector.broadcast %cst_132 : f32 to vector<8x128xf32>
      %c0_133 = arith.constant 0 : index
      %c0_134 = arith.constant 0 : index
      %331 = vector.load %arg10[%c0_133, %c0_134] : memref<8x128xf32, #tpu.memory_space<vmem>>, vector<8x128xf32>
      tpu.vector_store %arg10[%c0_133, %c0_134], %330 {strides = array<i32>} : memref<8x128xf32, #tpu.memory_space<vmem>>, vector<8x128xf32>,
      %cst_135 = arith.constant 0.000000e+00 : f32
      %332 = vector.broadcast %cst_135 : f32 to vector<8x128xf32>
      %c0_136 = arith.constant 0 : index
      %c0_137 = arith.constant 0 : index
      %333 = vector.load %arg11[%c0_136, %c0_137] : memref<8x128xf32, #tpu.memory_space<vmem>>, vector<8x128xf32>
      tpu.vector_store %arg11[%c0_136, %c0_137], %332 {strides = array<i32>} : memref<8x128xf32, #tpu.memory_space<vmem>>, vector<8x128xf32>,
    } else {
    }
    %c0 = arith.constant 0 : index
    %c0_1 = arith.constant 0 : index
    %c0_2 = arith.constant 0 : index
    %3 = vector.load %arg2[%c0, %c0_1, %c0_2] : memref<8x8x128xbf16, #tpu.memory_space<vmem>>, vector<8x8x128xbf16>
    %4 = vector.shape_cast %3 : vector<8x8x128xbf16> to vector<64x128xbf16>
    %c0_3 = arith.constant 0 : index
    %c0_4 = arith.constant 0 : index
    %5 = vector.load %arg3[%c0_3, %c0_4] : memref<128x512xbf16, #tpu.memory_space<vmem>>, vector<128x512xbf16>
    %cst = arith.constant dense<0.000000e+00> : vector<64x512xf32>
    %6 = tpu.matmul %4, %5, %cst {dimension_numbers = #tpu.dot_dimension_numbers<[1], [0], [0], [1], [0, 0, 1, 1], [], []>} : vector<64x128xbf16>, vector<128x512xbf16>, vector<64x512xf32> -> vector<64x512xf32>
    %c0_5 = arith.constant 0 : index
    %c0_6 = arith.constant 0 : index
    %7 = vector.load %arg5[%c0_5, %c0_6] : memref<1x512xf32, #tpu.memory_space<vmem>>, vector<1x512xf32>
    %8 = vector.broadcast %7 : vector<1x512xf32> to vector<64x512xf32>
    %9 = arith.addf %6, %8 : vector<64x512xf32>
    %c0_7 = arith.constant 0 : index
    %c0_8 = arith.constant 0 : index
    %10 = vector.load %arg9[%c0_7, %c0_8] : memref<64x512xf32, #tpu.memory_space<vmem>>, vector<64x512xf32>
    tpu.vector_store %arg9[%c0_7, %c0_8], %9 {strides = array<i32>} : memref<64x512xf32, #tpu.memory_space<vmem>>, vector<64x512xf32>,
    %c0_9 = arith.constant 0 : index
    %c0_10 = arith.constant 0 : index
    %11 = vector.load %arg10[%c0_9, %c0_10] : memref<8x128xf32, #tpu.memory_space<vmem>>, vector<8x128xf32>
    %c0_11 = arith.constant 0 : index
    %c0_12 = arith.constant 0 : index
    %12 = vector.load %arg11[%c0_11, %c0_12] : memref<8x128xf32, #tpu.memory_space<vmem>>, vector<8x128xf32>
    %c0_i32_13 = arith.constant 0 : i32
    %c8_i32 = arith.constant 8 : i32
    %13 = arith.muli %c0_i32_13, %c8_i32 : i32
    %14 = tpu.assume_multiple %13, 8 : i32
    %15 = arith.index_cast %14 : i32 to index
    %c0_14 = arith.constant 0 : index
    %16 = vector.load %arg9[%15, %c0_14] : memref<64x512xf32, #tpu.memory_space<vmem>>, vector<8x512xf32>
    %17 = arith.truncf %11 : vector<8x128xf32> to vector<8x128xbf16>
    %c0_15 = arith.constant 0 : index
    %c0_16 = arith.constant 0 : index
    %18 = vector.load %arg4[%c0_15, %c0_16] : memref<128x512xbf16, #tpu.memory_space<vmem>>, vector<128x512xbf16>
    %cst_17 = arith.constant dense<0.000000e+00> : vector<8x512xf32>
    %19 = tpu.matmul %17, %18, %cst_17 {dimension_numbers = #tpu.dot_dimension_numbers<[1], [0], [0], [1], [0, 0, 1, 1], [], []>} : vector<8x128xbf16>, vector<128x512xbf16>, vector<8x512xf32> -> vector<8x512xf32>
    %20 = arith.addf %16, %19 : vector<8x512xf32>
    %21 = vector.extract_strided_slice %20 {offsets = [0, 0], sizes = [8, 128], strides = [1, 1]} : vector<8x512xf32> to vector<8x128xf32>
    %cst_18 = arith.constant 5.000000e-01 : f32
    %22 = vector.broadcast %cst_18 : f32 to vector<8x128xf32>
    %23 = arith.mulf %22, %21 : vector<8x128xf32>
    %24 = math.tanh %23 : vector<8x128xf32>
    %cst_19 = arith.constant 1.000000e+00 : f32
    %25 = vector.broadcast %cst_19 : f32 to vector<8x128xf32>
    %26 = arith.addf %24, %25 : vector<8x128xf32>
    %cst_20 = arith.constant 5.000000e-01 : f32
    %27 = vector.broadcast %cst_20 : f32 to vector<8x128xf32>
    %28 = arith.mulf %27, %26 : vector<8x128xf32>
    %29 = vector.extract_strided_slice %20 {offsets = [0, 128], sizes = [8, 128], strides = [1, 1]} : vector<8x512xf32> to vector<8x128xf32>
    %cst_21 = arith.constant 5.000000e-01 : f32
    %30 = vector.broadcast %cst_21 : f32 to vector<8x128xf32>
    %31 = arith.mulf %30, %29 : vector<8x128xf32>
    %32 = math.tanh %31 : vector<8x128xf32>
    %cst_22 = arith.constant 1.000000e+00 : f32
    %33 = vector.broadcast %cst_22 : f32 to vector<8x128xf32>
    %34 = arith.addf %32, %33 : vector<8x128xf32>
    %cst_23 = arith.constant 5.000000e-01 : f32
    %35 = vector.broadcast %cst_23 : f32 to vector<8x128xf32>
    %36 = arith.mulf %35, %34 : vector<8x128xf32>
    %37 = vector.extract_strided_slice %20 {offsets = [0, 256], sizes = [8, 128], strides = [1, 1]} : vector<8x512xf32> to vector<8x128xf32>
    %38 = math.tanh %37 : vector<8x128xf32>
    %39 = vector.extract_strided_slice %20 {offsets = [0, 384], sizes = [8, 128], strides = [1, 1]} : vector<8x512xf32> to vector<8x128xf32>
    %cst_24 = arith.constant 5.000000e-01 : f32
    %40 = vector.broadcast %cst_24 : f32 to vector<8x128xf32>
    %41 = arith.mulf %40, %39 : vector<8x128xf32>
    %42 = math.tanh %41 : vector<8x128xf32>
    %cst_25 = arith.constant 1.000000e+00 : f32
    %43 = vector.broadcast %cst_25 : f32 to vector<8x128xf32>
    %44 = arith.addf %42, %43 : vector<8x128xf32>
    %cst_26 = arith.constant 5.000000e-01 : f32
    %45 = vector.broadcast %cst_26 : f32 to vector<8x128xf32>
    %46 = arith.mulf %45, %44 : vector<8x128xf32>
    %47 = arith.mulf %36, %12 : vector<8x128xf32>
    %48 = arith.mulf %28, %38 : vector<8x128xf32>
    %49 = arith.addf %47, %48 : vector<8x128xf32>
    %50 = math.tanh %49 : vector<8x128xf32>
    %51 = arith.mulf %46, %50 : vector<8x128xf32>
    %c1_i32 = arith.constant 1 : i32
    %c8_i32_27 = arith.constant 8 : i32
    %52 = arith.muli %c1_i32, %c8_i32_27 : i32
    %53 = tpu.assume_multiple %52, 8 : i32
    %54 = arith.index_cast %53 : i32 to index
    %c0_28 = arith.constant 0 : index
    %55 = vector.load %arg9[%54, %c0_28] : memref<64x512xf32, #tpu.memory_space<vmem>>, vector<8x512xf32>
    %56 = arith.truncf %51 : vector<8x128xf32> to vector<8x128xbf16>
    %c0_29 = arith.constant 0 : index
    %c0_30 = arith.constant 0 : index
    %57 = vector.load %arg4[%c0_29, %c0_30] : memref<128x512xbf16, #tpu.memory_space<vmem>>, vector<128x512xbf16>
    %cst_31 = arith.constant dense<0.000000e+00> : vector<8x512xf32>
    %58 = tpu.matmul %56, %57, %cst_31 {dimension_numbers = #tpu.dot_dimension_numbers<[1], [0], [0], [1], [0, 0, 1, 1], [], []>} : vector<8x128xbf16>, vector<128x512xbf16>, vector<8x512xf32> -> vector<8x512xf32>
    %59 = arith.addf %55, %58 : vector<8x512xf32>
    %60 = vector.extract_strided_slice %59 {offsets = [0, 0], sizes = [8, 128], strides = [1, 1]} : vector<8x512xf32> to vector<8x128xf32>
    %cst_32 = arith.constant 5.000000e-01 : f32
    %61 = vector.broadcast %cst_32 : f32 to vector<8x128xf32>
    %62 = arith.mulf %61, %60 : vector<8x128xf32>
    %63 = math.tanh %62 : vector<8x128xf32>
    %cst_33 = arith.constant 1.000000e+00 : f32
    %64 = vector.broadcast %cst_33 : f32 to vector<8x128xf32>
    %65 = arith.addf %63, %64 : vector<8x128xf32>
    %cst_34 = arith.constant 5.000000e-01 : f32
    %66 = vector.broadcast %cst_34 : f32 to vector<8x128xf32>
    %67 = arith.mulf %66, %65 : vector<8x128xf32>
    %68 = vector.extract_strided_slice %59 {offsets = [0, 128], sizes = [8, 128], strides = [1, 1]} : vector<8x512xf32> to vector<8x128xf32>
    %cst_35 = arith.constant 5.000000e-01 : f32
    %69 = vector.broadcast %cst_35 : f32 to vector<8x128xf32>
    %70 = arith.mulf %69, %68 : vector<8x128xf32>
    %71 = math.tanh %70 : vector<8x128xf32>
    %cst_36 = arith.constant 1.000000e+00 : f32
    %72 = vector.broadcast %cst_36 : f32 to vector<8x128xf32>
    %73 = arith.addf %71, %72 : vector<8x128xf32>
    %cst_37 = arith.constant 5.000000e-01 : f32
    %74 = vector.broadcast %cst_37 : f32 to vector<8x128xf32>
    %75 = arith.mulf %74, %73 : vector<8x128xf32>
    %76 = vector.extract_strided_slice %59 {offsets = [0, 256], sizes = [8, 128], strides = [1, 1]} : vector<8x512xf32> to vector<8x128xf32>
    %77 = math.tanh %76 : vector<8x128xf32>
    %78 = vector.extract_strided_slice %59 {offsets = [0, 384], sizes = [8, 128], strides = [1, 1]} : vector<8x512xf32> to vector<8x128xf32>
    %cst_38 = arith.constant 5.000000e-01 : f32
    %79 = vector.broadcast %cst_38 : f32 to vector<8x128xf32>
    %80 = arith.mulf %79, %78 : vector<8x128xf32>
    %81 = math.tanh %80 : vector<8x128xf32>
    %cst_39 = arith.constant 1.000000e+00 : f32
    %82 = vector.broadcast %cst_39 : f32 to vector<8x128xf32>
    %83 = arith.addf %81, %82 : vector<8x128xf32>
    %cst_40 = arith.constant 5.000000e-01 : f32
    %84 = vector.broadcast %cst_40 : f32 to vector<8x128xf32>
    %85 = arith.mulf %84, %83 : vector<8x128xf32>
    %86 = arith.mulf %75, %49 : vector<8x128xf32>
    %87 = arith.mulf %67, %77 : vector<8x128xf32>
    %88 = arith.addf %86, %87 : vector<8x128xf32>
    %89 = math.tanh %88 : vector<8x128xf32>
    %90 = arith.mulf %85, %89 : vector<8x128xf32>
    %c2_i32 = arith.constant 2 : i32
    %c8_i32_41 = arith.constant 8 : i32
    %91 = arith.muli %c2_i32, %c8_i32_41 : i32
    %92 = tpu.assume_multiple %91, 8 : i32
    %93 = arith.index_cast %92 : i32 to index
    %c0_42 = arith.constant 0 : index
    %94 = vector.load %arg9[%93, %c0_42] : memref<64x512xf32, #tpu.memory_space<vmem>>, vector<8x512xf32>
    %95 = arith.truncf %90 : vector<8x128xf32> to vector<8x128xbf16>
    %c0_43 = arith.constant 0 : index
    %c0_44 = arith.constant 0 : index
    %96 = vector.load %arg4[%c0_43, %c0_44] : memref<128x512xbf16, #tpu.memory_space<vmem>>, vector<128x512xbf16>
    %cst_45 = arith.constant dense<0.000000e+00> : vector<8x512xf32>
    %97 = tpu.matmul %95, %96, %cst_45 {dimension_numbers = #tpu.dot_dimension_numbers<[1], [0], [0], [1], [0, 0, 1, 1], [], []>} : vector<8x128xbf16>, vector<128x512xbf16>, vector<8x512xf32> -> vector<8x512xf32>
    %98 = arith.addf %94, %97 : vector<8x512xf32>
    %99 = vector.extract_strided_slice %98 {offsets = [0, 0], sizes = [8, 128], strides = [1, 1]} : vector<8x512xf32> to vector<8x128xf32>
    %cst_46 = arith.constant 5.000000e-01 : f32
    %100 = vector.broadcast %cst_46 : f32 to vector<8x128xf32>
    %101 = arith.mulf %100, %99 : vector<8x128xf32>
    %102 = math.tanh %101 : vector<8x128xf32>
    %cst_47 = arith.constant 1.000000e+00 : f32
    %103 = vector.broadcast %cst_47 : f32 to vector<8x128xf32>
    %104 = arith.addf %102, %103 : vector<8x128xf32>
    %cst_48 = arith.constant 5.000000e-01 : f32
    %105 = vector.broadcast %cst_48 : f32 to vector<8x128xf32>
    %106 = arith.mulf %105, %104 : vector<8x128xf32>
    %107 = vector.extract_strided_slice %98 {offsets = [0, 128], sizes = [8, 128], strides = [1, 1]} : vector<8x512xf32> to vector<8x128xf32>
    %cst_49 = arith.constant 5.000000e-01 : f32
    %108 = vector.broadcast %cst_49 : f32 to vector<8x128xf32>
    %109 = arith.mulf %108, %107 : vector<8x128xf32>
    %110 = math.tanh %109 : vector<8x128xf32>
    %cst_50 = arith.constant 1.000000e+00 : f32
    %111 = vector.broadcast %cst_50 : f32 to vector<8x128xf32>
    %112 = arith.addf %110, %111 : vector<8x128xf32>
    %cst_51 = arith.constant 5.000000e-01 : f32
    %113 = vector.broadcast %cst_51 : f32 to vector<8x128xf32>
    %114 = arith.mulf %113, %112 : vector<8x128xf32>
    %115 = vector.extract_strided_slice %98 {offsets = [0, 256], sizes = [8, 128], strides = [1, 1]} : vector<8x512xf32> to vector<8x128xf32>
    %116 = math.tanh %115 : vector<8x128xf32>
    %117 = vector.extract_strided_slice %98 {offsets = [0, 384], sizes = [8, 128], strides = [1, 1]} : vector<8x512xf32> to vector<8x128xf32>
    %cst_52 = arith.constant 5.000000e-01 : f32
    %118 = vector.broadcast %cst_52 : f32 to vector<8x128xf32>
    %119 = arith.mulf %118, %117 : vector<8x128xf32>
    %120 = math.tanh %119 : vector<8x128xf32>
    %cst_53 = arith.constant 1.000000e+00 : f32
    %121 = vector.broadcast %cst_53 : f32 to vector<8x128xf32>
    %122 = arith.addf %120, %121 : vector<8x128xf32>
    %cst_54 = arith.constant 5.000000e-01 : f32
    %123 = vector.broadcast %cst_54 : f32 to vector<8x128xf32>
    %124 = arith.mulf %123, %122 : vector<8x128xf32>
    %125 = arith.mulf %114, %88 : vector<8x128xf32>
    %126 = arith.mulf %106, %116 : vector<8x128xf32>
    %127 = arith.addf %125, %126 : vector<8x128xf32>
    %128 = math.tanh %127 : vector<8x128xf32>
    %129 = arith.mulf %124, %128 : vector<8x128xf32>
    %c3_i32 = arith.constant 3 : i32
    %c8_i32_55 = arith.constant 8 : i32
    %130 = arith.muli %c3_i32, %c8_i32_55 : i32
    %131 = tpu.assume_multiple %130, 8 : i32
    %132 = arith.index_cast %131 : i32 to index
    %c0_56 = arith.constant 0 : index
    %133 = vector.load %arg9[%132, %c0_56] : memref<64x512xf32, #tpu.memory_space<vmem>>, vector<8x512xf32>
    %134 = arith.truncf %129 : vector<8x128xf32> to vector<8x128xbf16>
    %c0_57 = arith.constant 0 : index
    %c0_58 = arith.constant 0 : index
    %135 = vector.load %arg4[%c0_57, %c0_58] : memref<128x512xbf16, #tpu.memory_space<vmem>>, vector<128x512xbf16>
    %cst_59 = arith.constant dense<0.000000e+00> : vector<8x512xf32>
    %136 = tpu.matmul %134, %135, %cst_59 {dimension_numbers = #tpu.dot_dimension_numbers<[1], [0], [0], [1], [0, 0, 1, 1], [], []>} : vector<8x128xbf16>, vector<128x512xbf16>, vector<8x512xf32> -> vector<8x512xf32>
    %137 = arith.addf %133, %136 : vector<8x512xf32>
    %138 = vector.extract_strided_slice %137 {offsets = [0, 0], sizes = [8, 128], strides = [1, 1]} : vector<8x512xf32> to vector<8x128xf32>
    %cst_60 = arith.constant 5.000000e-01 : f32
    %139 = vector.broadcast %cst_60 : f32 to vector<8x128xf32>
    %140 = arith.mulf %139, %138 : vector<8x128xf32>
    %141 = math.tanh %140 : vector<8x128xf32>
    %cst_61 = arith.constant 1.000000e+00 : f32
    %142 = vector.broadcast %cst_61 : f32 to vector<8x128xf32>
    %143 = arith.addf %141, %142 : vector<8x128xf32>
    %cst_62 = arith.constant 5.000000e-01 : f32
    %144 = vector.broadcast %cst_62 : f32 to vector<8x128xf32>
    %145 = arith.mulf %144, %143 : vector<8x128xf32>
    %146 = vector.extract_strided_slice %137 {offsets = [0, 128], sizes = [8, 128], strides = [1, 1]} : vector<8x512xf32> to vector<8x128xf32>
    %cst_63 = arith.constant 5.000000e-01 : f32
    %147 = vector.broadcast %cst_63 : f32 to vector<8x128xf32>
    %148 = arith.mulf %147, %146 : vector<8x128xf32>
    %149 = math.tanh %148 : vector<8x128xf32>
    %cst_64 = arith.constant 1.000000e+00 : f32
    %150 = vector.broadcast %cst_64 : f32 to vector<8x128xf32>
    %151 = arith.addf %149, %150 : vector<8x128xf32>
    %cst_65 = arith.constant 5.000000e-01 : f32
    %152 = vector.broadcast %cst_65 : f32 to vector<8x128xf32>
    %153 = arith.mulf %152, %151 : vector<8x128xf32>
    %154 = vector.extract_strided_slice %137 {offsets = [0, 256], sizes = [8, 128], strides = [1, 1]} : vector<8x512xf32> to vector<8x128xf32>
    %155 = math.tanh %154 : vector<8x128xf32>
    %156 = vector.extract_strided_slice %137 {offsets = [0, 384], sizes = [8, 128], strides = [1, 1]} : vector<8x512xf32> to vector<8x128xf32>
    %cst_66 = arith.constant 5.000000e-01 : f32
    %157 = vector.broadcast %cst_66 : f32 to vector<8x128xf32>
    %158 = arith.mulf %157, %156 : vector<8x128xf32>
    %159 = math.tanh %158 : vector<8x128xf32>
    %cst_67 = arith.constant 1.000000e+00 : f32
    %160 = vector.broadcast %cst_67 : f32 to vector<8x128xf32>
    %161 = arith.addf %159, %160 : vector<8x128xf32>
    %cst_68 = arith.constant 5.000000e-01 : f32
    %162 = vector.broadcast %cst_68 : f32 to vector<8x128xf32>
    %163 = arith.mulf %162, %161 : vector<8x128xf32>
    %164 = arith.mulf %153, %127 : vector<8x128xf32>
    %165 = arith.mulf %145, %155 : vector<8x128xf32>
    %166 = arith.addf %164, %165 : vector<8x128xf32>
    %167 = math.tanh %166 : vector<8x128xf32>
    %168 = arith.mulf %163, %167 : vector<8x128xf32>
    %c4_i32 = arith.constant 4 : i32
    %c8_i32_69 = arith.constant 8 : i32
    %169 = arith.muli %c4_i32, %c8_i32_69 : i32
    %170 = tpu.assume_multiple %169, 8 : i32
    %171 = arith.index_cast %170 : i32 to index
    %c0_70 = arith.constant 0 : index
    %172 = vector.load %arg9[%171, %c0_70] : memref<64x512xf32, #tpu.memory_space<vmem>>, vector<8x512xf32>
    %173 = arith.truncf %168 : vector<8x128xf32> to vector<8x128xbf16>
    %c0_71 = arith.constant 0 : index
    %c0_72 = arith.constant 0 : index
    %174 = vector.load %arg4[%c0_71, %c0_72] : memref<128x512xbf16, #tpu.memory_space<vmem>>, vector<128x512xbf16>
    %cst_73 = arith.constant dense<0.000000e+00> : vector<8x512xf32>
    %175 = tpu.matmul %173, %174, %cst_73 {dimension_numbers = #tpu.dot_dimension_numbers<[1], [0], [0], [1], [0, 0, 1, 1], [], []>} : vector<8x128xbf16>, vector<128x512xbf16>, vector<8x512xf32> -> vector<8x512xf32>
    %176 = arith.addf %172, %175 : vector<8x512xf32>
    %177 = vector.extract_strided_slice %176 {offsets = [0, 0], sizes = [8, 128], strides = [1, 1]} : vector<8x512xf32> to vector<8x128xf32>
    %cst_74 = arith.constant 5.000000e-01 : f32
    %178 = vector.broadcast %cst_74 : f32 to vector<8x128xf32>
    %179 = arith.mulf %178, %177 : vector<8x128xf32>
    %180 = math.tanh %179 : vector<8x128xf32>
    %cst_75 = arith.constant 1.000000e+00 : f32
    %181 = vector.broadcast %cst_75 : f32 to vector<8x128xf32>
    %182 = arith.addf %180, %181 : vector<8x128xf32>
    %cst_76 = arith.constant 5.000000e-01 : f32
    %183 = vector.broadcast %cst_76 : f32 to vector<8x128xf32>
    %184 = arith.mulf %183, %182 : vector<8x128xf32>
    %185 = vector.extract_strided_slice %176 {offsets = [0, 128], sizes = [8, 128], strides = [1, 1]} : vector<8x512xf32> to vector<8x128xf32>
    %cst_77 = arith.constant 5.000000e-01 : f32
    %186 = vector.broadcast %cst_77 : f32 to vector<8x128xf32>
    %187 = arith.mulf %186, %185 : vector<8x128xf32>
    %188 = math.tanh %187 : vector<8x128xf32>
    %cst_78 = arith.constant 1.000000e+00 : f32
    %189 = vector.broadcast %cst_78 : f32 to vector<8x128xf32>
    %190 = arith.addf %188, %189 : vector<8x128xf32>
    %cst_79 = arith.constant 5.000000e-01 : f32
    %191 = vector.broadcast %cst_79 : f32 to vector<8x128xf32>
    %192 = arith.mulf %191, %190 : vector<8x128xf32>
    %193 = vector.extract_strided_slice %176 {offsets = [0, 256], sizes = [8, 128], strides = [1, 1]} : vector<8x512xf32> to vector<8x128xf32>
    %194 = math.tanh %193 : vector<8x128xf32>
    %195 = vector.extract_strided_slice %176 {offsets = [0, 384], sizes = [8, 128], strides = [1, 1]} : vector<8x512xf32> to vector<8x128xf32>
    %cst_80 = arith.constant 5.000000e-01 : f32
    %196 = vector.broadcast %cst_80 : f32 to vector<8x128xf32>
    %197 = arith.mulf %196, %195 : vector<8x128xf32>
    %198 = math.tanh %197 : vector<8x128xf32>
    %cst_81 = arith.constant 1.000000e+00 : f32
    %199 = vector.broadcast %cst_81 : f32 to vector<8x128xf32>
    %200 = arith.addf %198, %199 : vector<8x128xf32>
    %cst_82 = arith.constant 5.000000e-01 : f32
    %201 = vector.broadcast %cst_82 : f32 to vector<8x128xf32>
    %202 = arith.mulf %201, %200 : vector<8x128xf32>
    %203 = arith.mulf %192, %166 : vector<8x128xf32>
    %204 = arith.mulf %184, %194 : vector<8x128xf32>
    %205 = arith.addf %203, %204 : vector<8x128xf32>
    %206 = math.tanh %205 : vector<8x128xf32>
    %207 = arith.mulf %202, %206 : vector<8x128xf32>
    %c5_i32 = arith.constant 5 : i32
    %c8_i32_83 = arith.constant 8 : i32
    %208 = arith.muli %c5_i32, %c8_i32_83 : i32
    %209 = tpu.assume_multiple %208, 8 : i32
    %210 = arith.index_cast %209 : i32 to index
    %c0_84 = arith.constant 0 : index
    %211 = vector.load %arg9[%210, %c0_84] : memref<64x512xf32, #tpu.memory_space<vmem>>, vector<8x512xf32>
    %212 = arith.truncf %207 : vector<8x128xf32> to vector<8x128xbf16>
    %c0_85 = arith.constant 0 : index
    %c0_86 = arith.constant 0 : index
    %213 = vector.load %arg4[%c0_85, %c0_86] : memref<128x512xbf16, #tpu.memory_space<vmem>>, vector<128x512xbf16>
    %cst_87 = arith.constant dense<0.000000e+00> : vector<8x512xf32>
    %214 = tpu.matmul %212, %213, %cst_87 {dimension_numbers = #tpu.dot_dimension_numbers<[1], [0], [0], [1], [0, 0, 1, 1], [], []>} : vector<8x128xbf16>, vector<128x512xbf16>, vector<8x512xf32> -> vector<8x512xf32>
    %215 = arith.addf %211, %214 : vector<8x512xf32>
    %216 = vector.extract_strided_slice %215 {offsets = [0, 0], sizes = [8, 128], strides = [1, 1]} : vector<8x512xf32> to vector<8x128xf32>
    %cst_88 = arith.constant 5.000000e-01 : f32
    %217 = vector.broadcast %cst_88 : f32 to vector<8x128xf32>
    %218 = arith.mulf %217, %216 : vector<8x128xf32>
    %219 = math.tanh %218 : vector<8x128xf32>
    %cst_89 = arith.constant 1.000000e+00 : f32
    %220 = vector.broadcast %cst_89 : f32 to vector<8x128xf32>
    %221 = arith.addf %219, %220 : vector<8x128xf32>
    %cst_90 = arith.constant 5.000000e-01 : f32
    %222 = vector.broadcast %cst_90 : f32 to vector<8x128xf32>
    %223 = arith.mulf %222, %221 : vector<8x128xf32>
    %224 = vector.extract_strided_slice %215 {offsets = [0, 128], sizes = [8, 128], strides = [1, 1]} : vector<8x512xf32> to vector<8x128xf32>
    %cst_91 = arith.constant 5.000000e-01 : f32
    %225 = vector.broadcast %cst_91 : f32 to vector<8x128xf32>
    %226 = arith.mulf %225, %224 : vector<8x128xf32>
    %227 = math.tanh %226 : vector<8x128xf32>
    %cst_92 = arith.constant 1.000000e+00 : f32
    %228 = vector.broadcast %cst_92 : f32 to vector<8x128xf32>
    %229 = arith.addf %227, %228 : vector<8x128xf32>
    %cst_93 = arith.constant 5.000000e-01 : f32
    %230 = vector.broadcast %cst_93 : f32 to vector<8x128xf32>
    %231 = arith.mulf %230, %229 : vector<8x128xf32>
    %232 = vector.extract_strided_slice %215 {offsets = [0, 256], sizes = [8, 128], strides = [1, 1]} : vector<8x512xf32> to vector<8x128xf32>
    %233 = math.tanh %232 : vector<8x128xf32>
    %234 = vector.extract_strided_slice %215 {offsets = [0, 384], sizes = [8, 128], strides = [1, 1]} : vector<8x512xf32> to vector<8x128xf32>
    %cst_94 = arith.constant 5.000000e-01 : f32
    %235 = vector.broadcast %cst_94 : f32 to vector<8x128xf32>
    %236 = arith.mulf %235, %234 : vector<8x128xf32>
    %237 = math.tanh %236 : vector<8x128xf32>
    %cst_95 = arith.constant 1.000000e+00 : f32
    %238 = vector.broadcast %cst_95 : f32 to vector<8x128xf32>
    %239 = arith.addf %237, %238 : vector<8x128xf32>
    %cst_96 = arith.constant 5.000000e-01 : f32
    %240 = vector.broadcast %cst_96 : f32 to vector<8x128xf32>
    %241 = arith.mulf %240, %239 : vector<8x128xf32>
    %242 = arith.mulf %231, %205 : vector<8x128xf32>
    %243 = arith.mulf %223, %233 : vector<8x128xf32>
    %244 = arith.addf %242, %243 : vector<8x128xf32>
    %245 = math.tanh %244 : vector<8x128xf32>
    %246 = arith.mulf %241, %245 : vector<8x128xf32>
    %c6_i32 = arith.constant 6 : i32
    %c8_i32_97 = arith.constant 8 : i32
    %247 = arith.muli %c6_i32, %c8_i32_97 : i32
    %248 = tpu.assume_multiple %247, 8 : i32
    %249 = arith.index_cast %248 : i32 to index
    %c0_98 = arith.constant 0 : index
    %250 = vector.load %arg9[%249, %c0_98] : memref<64x512xf32, #tpu.memory_space<vmem>>, vector<8x512xf32>
    %251 = arith.truncf %246 : vector<8x128xf32> to vector<8x128xbf16>
    %c0_99 = arith.constant 0 : index
    %c0_100 = arith.constant 0 : index
    %252 = vector.load %arg4[%c0_99, %c0_100] : memref<128x512xbf16, #tpu.memory_space<vmem>>, vector<128x512xbf16>
    %cst_101 = arith.constant dense<0.000000e+00> : vector<8x512xf32>
    %253 = tpu.matmul %251, %252, %cst_101 {dimension_numbers = #tpu.dot_dimension_numbers<[1], [0], [0], [1], [0, 0, 1, 1], [], []>} : vector<8x128xbf16>, vector<128x512xbf16>, vector<8x512xf32> -> vector<8x512xf32>
    %254 = arith.addf %250, %253 : vector<8x512xf32>
    %255 = vector.extract_strided_slice %254 {offsets = [0, 0], sizes = [8, 128], strides = [1, 1]} : vector<8x512xf32> to vector<8x128xf32>
    %cst_102 = arith.constant 5.000000e-01 : f32
    %256 = vector.broadcast %cst_102 : f32 to vector<8x128xf32>
    %257 = arith.mulf %256, %255 : vector<8x128xf32>
    %258 = math.tanh %257 : vector<8x128xf32>
    %cst_103 = arith.constant 1.000000e+00 : f32
    %259 = vector.broadcast %cst_103 : f32 to vector<8x128xf32>
    %260 = arith.addf %258, %259 : vector<8x128xf32>
    %cst_104 = arith.constant 5.000000e-01 : f32
    %261 = vector.broadcast %cst_104 : f32 to vector<8x128xf32>
    %262 = arith.mulf %261, %260 : vector<8x128xf32>
    %263 = vector.extract_strided_slice %254 {offsets = [0, 128], sizes = [8, 128], strides = [1, 1]} : vector<8x512xf32> to vector<8x128xf32>
    %cst_105 = arith.constant 5.000000e-01 : f32
    %264 = vector.broadcast %cst_105 : f32 to vector<8x128xf32>
    %265 = arith.mulf %264, %263 : vector<8x128xf32>
    %266 = math.tanh %265 : vector<8x128xf32>
    %cst_106 = arith.constant 1.000000e+00 : f32
    %267 = vector.broadcast %cst_106 : f32 to vector<8x128xf32>
    %268 = arith.addf %266, %267 : vector<8x128xf32>
    %cst_107 = arith.constant 5.000000e-01 : f32
    %269 = vector.broadcast %cst_107 : f32 to vector<8x128xf32>
    %270 = arith.mulf %269, %268 : vector<8x128xf32>
    %271 = vector.extract_strided_slice %254 {offsets = [0, 256], sizes = [8, 128], strides = [1, 1]} : vector<8x512xf32> to vector<8x128xf32>
    %272 = math.tanh %271 : vector<8x128xf32>
    %273 = vector.extract_strided_slice %254 {offsets = [0, 384], sizes = [8, 128], strides = [1, 1]} : vector<8x512xf32> to vector<8x128xf32>
    %cst_108 = arith.constant 5.000000e-01 : f32
    %274 = vector.broadcast %cst_108 : f32 to vector<8x128xf32>
    %275 = arith.mulf %274, %273 : vector<8x128xf32>
    %276 = math.tanh %275 : vector<8x128xf32>
    %cst_109 = arith.constant 1.000000e+00 : f32
    %277 = vector.broadcast %cst_109 : f32 to vector<8x128xf32>
    %278 = arith.addf %276, %277 : vector<8x128xf32>
    %cst_110 = arith.constant 5.000000e-01 : f32
    %279 = vector.broadcast %cst_110 : f32 to vector<8x128xf32>
    %280 = arith.mulf %279, %278 : vector<8x128xf32>
    %281 = arith.mulf %270, %244 : vector<8x128xf32>
    %282 = arith.mulf %262, %272 : vector<8x128xf32>
    %283 = arith.addf %281, %282 : vector<8x128xf32>
    %284 = math.tanh %283 : vector<8x128xf32>
    %285 = arith.mulf %280, %284 : vector<8x128xf32>
    %c7_i32 = arith.constant 7 : i32
    %c8_i32_111 = arith.constant 8 : i32
    %286 = arith.muli %c7_i32, %c8_i32_111 : i32
    %287 = tpu.assume_multiple %286, 8 : i32
    %288 = arith.index_cast %287 : i32 to index
    %c0_112 = arith.constant 0 : index
    %289 = vector.load %arg9[%288, %c0_112] : memref<64x512xf32, #tpu.memory_space<vmem>>, vector<8x512xf32>
    %290 = arith.truncf %285 : vector<8x128xf32> to vector<8x128xbf16>
    %c0_113 = arith.constant 0 : index
    %c0_114 = arith.constant 0 : index
    %291 = vector.load %arg4[%c0_113, %c0_114] : memref<128x512xbf16, #tpu.memory_space<vmem>>, vector<128x512xbf16>
    %cst_115 = arith.constant dense<0.000000e+00> : vector<8x512xf32>
    %292 = tpu.matmul %290, %291, %cst_115 {dimension_numbers = #tpu.dot_dimension_numbers<[1], [0], [0], [1], [0, 0, 1, 1], [], []>} : vector<8x128xbf16>, vector<128x512xbf16>, vector<8x512xf32> -> vector<8x512xf32>
    %293 = arith.addf %289, %292 : vector<8x512xf32>
    %294 = vector.extract_strided_slice %293 {offsets = [0, 0], sizes = [8, 128], strides = [1, 1]} : vector<8x512xf32> to vector<8x128xf32>
    %cst_116 = arith.constant 5.000000e-01 : f32
    %295 = vector.broadcast %cst_116 : f32 to vector<8x128xf32>
    %296 = arith.mulf %295, %294 : vector<8x128xf32>
    %297 = math.tanh %296 : vector<8x128xf32>
    %cst_117 = arith.constant 1.000000e+00 : f32
    %298 = vector.broadcast %cst_117 : f32 to vector<8x128xf32>
    %299 = arith.addf %297, %298 : vector<8x128xf32>
    %cst_118 = arith.constant 5.000000e-01 : f32
    %300 = vector.broadcast %cst_118 : f32 to vector<8x128xf32>
    %301 = arith.mulf %300, %299 : vector<8x128xf32>
    %302 = vector.extract_strided_slice %293 {offsets = [0, 128], sizes = [8, 128], strides = [1, 1]} : vector<8x512xf32> to vector<8x128xf32>
    %cst_119 = arith.constant 5.000000e-01 : f32
    %303 = vector.broadcast %cst_119 : f32 to vector<8x128xf32>
    %304 = arith.mulf %303, %302 : vector<8x128xf32>
    %305 = math.tanh %304 : vector<8x128xf32>
    %cst_120 = arith.constant 1.000000e+00 : f32
    %306 = vector.broadcast %cst_120 : f32 to vector<8x128xf32>
    %307 = arith.addf %305, %306 : vector<8x128xf32>
    %cst_121 = arith.constant 5.000000e-01 : f32
    %308 = vector.broadcast %cst_121 : f32 to vector<8x128xf32>
    %309 = arith.mulf %308, %307 : vector<8x128xf32>
    %310 = vector.extract_strided_slice %293 {offsets = [0, 256], sizes = [8, 128], strides = [1, 1]} : vector<8x512xf32> to vector<8x128xf32>
    %311 = math.tanh %310 : vector<8x128xf32>
    %312 = vector.extract_strided_slice %293 {offsets = [0, 384], sizes = [8, 128], strides = [1, 1]} : vector<8x512xf32> to vector<8x128xf32>
    %cst_122 = arith.constant 5.000000e-01 : f32
    %313 = vector.broadcast %cst_122 : f32 to vector<8x128xf32>
    %314 = arith.mulf %313, %312 : vector<8x128xf32>
    %315 = math.tanh %314 : vector<8x128xf32>
    %cst_123 = arith.constant 1.000000e+00 : f32
    %316 = vector.broadcast %cst_123 : f32 to vector<8x128xf32>
    %317 = arith.addf %315, %316 : vector<8x128xf32>
    %cst_124 = arith.constant 5.000000e-01 : f32
    %318 = vector.broadcast %cst_124 : f32 to vector<8x128xf32>
    %319 = arith.mulf %318, %317 : vector<8x128xf32>
    %320 = arith.mulf %309, %283 : vector<8x128xf32>
    %321 = arith.mulf %301, %311 : vector<8x128xf32>
    %322 = arith.addf %320, %321 : vector<8x128xf32>
    %323 = math.tanh %322 : vector<8x128xf32>
    %324 = arith.mulf %319, %323 : vector<8x128xf32>
    %c8_i32_125 = arith.constant 8 : i32
    %c0_126 = arith.constant 0 : index
    %c0_127 = arith.constant 0 : index
    %325 = vector.load %arg10[%c0_126, %c0_127] : memref<8x128xf32, #tpu.memory_space<vmem>>, vector<8x128xf32>
    tpu.vector_store %arg10[%c0_126, %c0_127], %324 {strides = array<i32>} : memref<8x128xf32, #tpu.memory_space<vmem>>, vector<8x128xf32>,
    %c0_128 = arith.constant 0 : index
    %c0_129 = arith.constant 0 : index
    %326 = vector.load %arg11[%c0_128, %c0_129] : memref<8x128xf32, #tpu.memory_space<vmem>>, vector<8x128xf32>
    tpu.vector_store %arg11[%c0_128, %c0_129], %322 {strides = array<i32>} : memref<8x128xf32, #tpu.memory_space<vmem>>, vector<8x128xf32>,
    %c0_i32_130 = arith.constant 0 : i32
    %327 = arith.cmpi eq, %arg1, %c0_i32_130 : i32
    %328 = arith.extui %327 : i1 to i32
    %c0_i32_131 = arith.constant 0 : i32
    %329 = arith.cmpi ne, %328, %c0_i32_131 : i32
    scf.if %329 {
      %330 = arith.truncf %324 : vector<8x128xf32> to vector<8x128xbf16>
      %c0_132 = arith.constant 0 : index
      %c0_133 = arith.constant 0 : index
      %331 = vector.load %arg6[%c0_132, %c0_133] : memref<128x128xbf16, #tpu.memory_space<vmem>>, vector<128x128xbf16>
      %cst_134 = arith.constant dense<0.000000e+00> : vector<8x128xf32>
      %332 = tpu.matmul %330, %331, %cst_134 {dimension_numbers = #tpu.dot_dimension_numbers<[1], [0], [0], [1], [0, 0, 1, 1], [], []>} : vector<8x128xbf16>, vector<128x128xbf16>, vector<8x128xf32> -> vector<8x128xf32>
      %c0_135 = arith.constant 0 : index
      %c0_136 = arith.constant 0 : index
      %333 = vector.load %arg7[%c0_135, %c0_136] : memref<1x128xf32, #tpu.memory_space<vmem>>, vector<1x128xf32>
      %334 = vector.broadcast %333 : vector<1x128xf32> to vector<8x128xf32>
      %335 = arith.addf %332, %334 : vector<8x128xf32>
      %cst_137 = arith.constant 5.000000e-01 : f32
      %336 = vector.broadcast %cst_137 : f32 to vector<8x128xf32>
      %337 = arith.mulf %336, %335 : vector<8x128xf32>
      %338 = math.tanh %337 : vector<8x128xf32>
      %cst_138 = arith.constant 1.000000e+00 : f32
      %339 = vector.broadcast %cst_138 : f32 to vector<8x128xf32>
      %340 = arith.addf %338, %339 : vector<8x128xf32>
      %cst_139 = arith.constant 5.000000e-01 : f32
      %341 = vector.broadcast %cst_139 : f32 to vector<8x128xf32>
      %342 = arith.mulf %341, %340 : vector<8x128xf32>
      %c0_140 = arith.constant 0 : index
      %c0_141 = arith.constant 0 : index
      %343 = vector.load %arg8[%c0_140, %c0_141] : memref<8x128xf32, #tpu.memory_space<vmem>>, vector<8x128xf32>
      tpu.vector_store %arg8[%c0_140, %c0_141], %342 {strides = array<i32>} : memref<8x128xf32, #tpu.memory_space<vmem>>, vector<8x128xf32>,
    } else {
    }
    return
  }
  func.func @transform_0(%arg0: i32, %arg1: i32) -> (i32, i32, i32) {
    %c0_i32 = arith.constant 0 : i32
    %c0_i32_0 = arith.constant 0 : i32
    return %arg1, %arg0, %c0_i32 : i32, i32, i32
  }
  func.func @transform_1(%arg0: i32, %arg1: i32) -> (i32, i32) {
    %c0_i32 = arith.constant 0 : i32
    %c0_i32_0 = arith.constant 0 : i32
    %c0_i32_1 = arith.constant 0 : i32
    return %c0_i32, %c0_i32_0 : i32, i32
  }
  func.func @transform_2(%arg0: i32, %arg1: i32) -> (i32, i32) {
    %c0_i32 = arith.constant 0 : i32
    %c0_i32_0 = arith.constant 0 : i32
    %c0_i32_1 = arith.constant 0 : i32
    return %c0_i32, %c0_i32_0 : i32, i32
  }
  func.func @transform_3(%arg0: i32, %arg1: i32) -> (i32, i32) {
    %c0_i32 = arith.constant 0 : i32
    %c0_i32_0 = arith.constant 0 : i32
    %c0_i32_1 = arith.constant 0 : i32
    return %c0_i32, %c0_i32_0 : i32, i32
  }
  func.func @transform_4(%arg0: i32, %arg1: i32) -> (i32, i32) {
    %c0_i32 = arith.constant 0 : i32
    %c0_i32_0 = arith.constant 0 : i32
    %c0_i32_1 = arith.constant 0 : i32
    return %c0_i32, %c0_i32_0 : i32, i32
  }
  func.func @transform_5(%arg0: i32, %arg1: i32) -> (i32, i32) {
    %c0_i32 = arith.constant 0 : i32
    %c0_i32_0 = arith.constant 0 : i32
    %c0_i32_1 = arith.constant 0 : i32
    return %c0_i32, %c0_i32_0 : i32, i32
  }
  func.func @transform_6(%arg0: i32, %arg1: i32) -> (i32, i32) {
    %c0_i32 = arith.constant 0 : i32
    %c0_i32_0 = arith.constant 0 : i32
    return %arg0, %c0_i32 : i32, i32
  }
}

</mosaic_0001>

<llo_original>
// kernel: tpu_custom_call.1
$region0: #{tpu_custom_call.1}
  #allocation0 [shape = 'u32[]', space=smem, size = 0x4, offset = 0x4, fixed_abs, tag = 'smem constant byte address 0x4 - core index']
  #allocation1 [shape = 'u32[144,128]{1,0:T(1,128)}', space=vmem, size = 0x12000, scoped, tag = 'internal scratch']
  #allocation2 [shape = 'f32[64,512]{1,0:T(8,128)}', space=vmem, size = 0x20000, scoped, tag = 'scratch operand']
  #allocation3 [shape = 'f32[8,128]{1,0:T(8,128)}', space=vmem, size = 0x1000, scoped, tag = 'scratch operand']
  #allocation4 [shape = 'f32[8,128]{1,0:T(8,128)}', space=vmem, size = 0x1000, scoped, tag = 'scratch operand']
  %s0 = inlined_call_operand.hbm [shape: bf16[8,8,128], index: 0, kind: input, shape index: {}]
  %s1 = inlined_call_operand.hbm [shape: bf16[128,512], index: 1, kind: input, shape index: {}]
  %s2 = inlined_call_operand.hbm [shape: bf16[128,512], index: 2, kind: input, shape index: {}]
  %s3 = inlined_call_operand.vmem [shape: f32[1,512], index: 3, kind: input, shape index: {}]
  %s4 = inlined_call_operand.hbm [shape: bf16[128,128], index: 4, kind: input, shape index: {}]
  %s5 = inlined_call_operand.vmem [shape: f32[1,128], index: 5, kind: input, shape index: {}]
  %s6 = inlined_call_operand.hbm [shape: f32[8,128], index: 6, kind: output, shape index: {}]
  %s7 = sld [smem:[#allocation0]]
  $region58: #{tpu_custom_call.1} parent=0
    _
  %s9 = ssub.s32 1, %s7
  %s10 = scalar_select 0, %s9, %s7
  $region1: #{tpu_custom_call.1} parent=0
    #allocation5 [shape = 'u8[16384]{0}', space=vmem, size = 0x4000, scoped, tag = 'input window, operand 0, single buffered']
    #allocation6 [shape = 's32[1]{0}', space=sflag, size = 0x4, scoped, tag = 'scoped memory for tpu_custom_call.1']
    #allocation7 [shape = 's32[1]{0}', space=sflag, size = 0x4, scoped, tag = 'scoped memory for tpu_custom_call.1']
    #allocation8 [shape = 'u8[131072]{0}', space=vmem, size = 0x20000, scoped, tag = 'input window, operand 1, single buffered']
    #allocation9 [shape = 's32[1]{0}', space=sflag, size = 0x4, scoped, tag = 'scoped memory for tpu_custom_call.1']
    #allocation10 [shape = 'u8[131072]{0}', space=vmem, size = 0x20000, scoped, tag = 'input window, operand 2, single buffered']
    #allocation11 [shape = 'u8[32768]{0}', space=vmem, size = 0x8000, scoped, tag = 'input window, operand 4, single buffered']
    #allocation12 [shape = 's32[1]{0}', space=sflag, size = 0x4, scoped, tag = 'scoped memory for tpu_custom_call.1']
    #allocation13 [shape = 'u8[4096]{0}', space=vmem, size = 0x1000, scoped, tag = 'output window, operand 0, single buffered']
    %11 = vsyncpa [#allocation6], 0
    %12 = vsyncpa [#allocation9], 0
    %13 = vsyncpa [#allocation12], 0
    %14 = vsyncpa [#allocation7], 0
    // Predicated region
    $region2: #{tpu_custom_call.1} parent=1 // pred_check
      _
    $region3: #{tpu_custom_call.1} parent=1 // pred_check_branch
      %16 = sbr.rel (0) target = $region5
    $region4: #{tpu_custom_call.1} parent=1 // pred_region
      %s18 = ssub.s32 512, 512
      %19 = vsyncadd [#allocation6], %s18
      %s20 = sshll.u32 [#allocation5], 4
      %s21 = int_to_ptr.vmem [resolvable:$true] %s20
      %26 = dma.hbm_to_vmem [thread:$0]  %s0, 512, %s21, [#allocation6], 64, 64, 4
    $region5: #{tpu_custom_call.1} parent=1 // pred_fallthru
      _
    // Predicated region
    $region6: #{tpu_custom_call.1} parent=1 // pred_check
      _
    $region7: #{tpu_custom_call.1} parent=1 // pred_check_branch
      %28 = sbr.rel (0) target = $region9
    $region8: #{tpu_custom_call.1} parent=1 // pred_region
      %s30 = ssub.s32 4096, 4096
      %31 = vsyncadd [#allocation9], %s30
      %s32 = sshll.u32 [#allocation8], 4
      %s33 = int_to_ptr.vmem [resolvable:$true] %s32
      %38 = dma.hbm_to_vmem [thread:$0]  %s1, 4096, %s33, [#allocation9], 256, 256, 16
    $region9: #{tpu_custom_call.1} parent=1 // pred_fallthru
      _
    // Predicated region
    $region10: #{tpu_custom_call.1} parent=1 // pred_check
      _
    $region11: #{tpu_custom_call.1} parent=1 // pred_check_branch
      %40 = sbr.rel (0) target = $region13
    $region12: #{tpu_custom_call.1} parent=1 // pred_region
      %s42 = ssub.s32 4096, 4096
      %43 = vsyncadd [#allocation9], %s42
      %s44 = sshll.u32 [#allocation10], 4
      %s45 = int_to_ptr.vmem [resolvable:$true] %s44
      %50 = dma.hbm_to_vmem [thread:$0]  %s2, 4096, %s45, [#allocation9], 256, 256, 16
    $region13: #{tpu_custom_call.1} parent=1 // pred_fallthru
      _
    // Predicated region
    $region14: #{tpu_custom_call.1} parent=1 // pred_check
      _
    $region15: #{tpu_custom_call.1} parent=1 // pred_check_branch
      %52 = sbr.rel (0) target = $region17
    $region16: #{tpu_custom_call.1} parent=1 // pred_region
      _
    $region17: #{tpu_custom_call.1} parent=1 // pred_fallthru
      _
    // Predicated region
    $region18: #{tpu_custom_call.1} parent=1 // pred_check
      _
    $region19: #{tpu_custom_call.1} parent=1 // pred_check_branch
      %54 = sbr.rel (0) target = $region21
    $region20: #{tpu_custom_call.1} parent=1 // pred_region
      %s56 = ssub.s32 1024, 1024
      %57 = vsyncadd [#allocation12], %s56
      %s58 = sshll.u32 [#allocation11], 4
      %s59 = int_to_ptr.vmem [resolvable:$true] %s58
      %64 = dma.hbm_to_vmem [thread:$0]  %s4, 1024, %s59, [#allocation12], 64, 64, 4
    $region21: #{tpu_custom_call.1} parent=1 // pred_fallthru
      _
    // Predicated region
    $region22: #{tpu_custom_call.1} parent=1 // pred_check
      _
    $region23: #{tpu_custom_call.1} parent=1 // pred_check_branch
      %66 = sbr.rel (0) target = $region25
    $region24: #{tpu_custom_call.1} parent=1 // pred_region
      _
    $region25: #{tpu_custom_call.1} parent=1 // pred_fallthru
      _
    // Predicated region
    $region26: #{tpu_custom_call.1} parent=1 // pred_check
      _
    $region27: #{tpu_custom_call.1} parent=1 // pred_check_branch
      %68 = sbr.rel (0) target = $region29
    $region28: #{tpu_custom_call.1} parent=1 // pred_region
      %69 = dma.done [#allocation6], 512
    $region29: #{tpu_custom_call.1} parent=1 // pred_fallthru
      _
    // Predicated region
    $region30: #{tpu_custom_call.1} parent=1 // pred_check
      _
    $region31: #{tpu_custom_call.1} parent=1 // pred_check_branch
      %71 = sbr.rel (0) target = $region33
    $region32: #{tpu_custom_call.1} parent=1 // pred_region
      %72 = dma.done [#allocation9], 4096
    $region33: #{tpu_custom_call.1} parent=1 // pred_fallthru
      _
    // Predicated region
    $region34: #{tpu_custom_call.1} parent=1 // pred_check
      _
    $region35: #{tpu_custom_call.1} parent=1 // pred_check_branch
      %74 = sbr.rel (0) target = $region37
    $region36: #{tpu_custom_call.1} parent=1 // pred_region
      %75 = dma.done [#allocation9], 4096
    $region37: #{tpu_custom_call.1} parent=1 // pred_fallthru
      _
    // Predicated region
    $region38: #{tpu_custom_call.1} parent=1 // pred_check
      _
    $region39: #{tpu_custom_call.1} parent=1 // pred_check_branch
      %77 = sbr.rel (0) target = $region41
    $region40: #{tpu_custom_call.1} parent=1 // pred_region
      %78 = dma.done [#allocation12], 1024
    $region41: #{tpu_custom_call.1} parent=1 // pred_fallthru
      _
    %p80 = scmp.eq.s32.totalorder 0, 0
    // Predicated region
    $region42: #{tpu_custom_call.1} parent=1 // pred_check
      %p81 = pneg %p80
    $region43: #{tpu_custom_call.1} parent=1 // pred_check_branch
      %83 = sbr.rel (%p81) target = $region45
    $region44: #{tpu_custom_call.1} parent=1 // pred_region
      %84 = vst [vmem:[#allocation3] sm:$0xff] 0.0
      %85 = vst [vmem:[#allocation4] sm:$0xff] 0.0
    $region45: #{tpu_custom_call.1} parent=1 // pred_fallthru
      _
    %v86 = vld [vmem:[#allocation5] sm:$0xf]
    %v87 = vld [vmem:[#allocation5 + $0x4] sm:$0xf]
    %v88 = vld [vmem:[#allocation5 + $0x8] sm:$0xf]
    %v89 = vld [vmem:[#allocation5 + $0xc] sm:$0xf]
    %v90 = vld [vmem:[#allocation5 + $0x10] sm:$0xf]
    %v91 = vld [vmem:[#allocation5 + $0x14] sm:$0xf]
    %v92 = vld [vmem:[#allocation5 + $0x18] sm:$0xf]
    %v93 = vld [vmem:[#allocation5 + $0x1c] sm:$0xf]
    %v94 = vld [vmem:[#allocation8] sm:$0xff]
    %v95 = vld [vmem:[#allocation8 + $0x8] sm:$0xff]
    %v96 = vld [vmem:[#allocation8 + $0x10] sm:$0xff]
    %v97 = vld [vmem:[#allocation8 + $0x18] sm:$0xff]
    %v98 = vld [vmem:[#allocation8 + $0x20] sm:$0xff]
    %v99 = vld [vmem:[#allocation8 + $0x28] sm:$0xff]
    %v100 = vld [vmem:[#allocation8 + $0x30] sm:$0xff]
    %v101 = vld [vmem:[#allocation8 + $0x38] sm:$0xff]
    %v102 = vld [vmem:[#allocation8 + $0x40] sm:$0xff]
    %v103 = vld [vmem:[#allocation8 + $0x48] sm:$0xff]
    %v104 = vld [vmem:[#allocation8 + $0x50] sm:$0xff]
    %v105 = vld [vmem:[#allocation8 + $0x58] sm:$0xff]
    %v106 = vld [vmem:[#allocation8 + $0x60] sm:$0xff]
    %v107 = vld [vmem:[#allocation8 + $0x68] sm:$0xff]
    %v108 = vld [vmem:[#allocation8 + $0x70] sm:$0xff]
    %v109 = vld [vmem:[#allocation8 + $0x78] sm:$0xff]
    %v110 = vld [vmem:[#allocation8 + $0x80] sm:$0xff]
    %v111 = vld [vmem:[#allocation8 + $0x88] sm:$0xff]
    %v112 = vld [vmem:[#allocation8 + $0x90] sm:$0xff]
    %v113 = vld [vmem:[#allocation8 + $0x98] sm:$0xff]
    %v114 = vld [vmem:[#allocation8 + $0xa0] sm:$0xff]
    %v115 = vld [vmem:[#allocation8 + $0xa8] sm:$0xff]
    %v116 = vld [vmem:[#allocation8 + $0xb0] sm:$0xff]
    %v117 = vld [vmem:[#allocation8 + $0xb8] sm:$0xff]
    %v118 = vld [vmem:[#allocation8 + $0xc0] sm:$0xff]
    %v119 = vld [vmem:[#allocation8 + $0xc8] sm:$0xff]
    %v120 = vld [vmem:[#allocation8 + $0xd0] sm:$0xff]
    %v121 = vld [vmem:[#allocation8 + $0xd8] sm:$0xff]
    %v122 = vld [vmem:[#allocation8 + $0xe0] sm:$0xff]
    %v123 = vld [vmem:[#allocation8 + $0xe8] sm:$0xff]
    %v124 = vld [vmem:[#allocation8 + $0xf0] sm:$0xff]
    %v125 = vld [vmem:[#allocation8 + $0xf8] sm:$0xff]
    %v126 = vld [vmem:[%s3] sm:$0xf]
    %v128 = vlaneseq
    %v129 = vshrl.u32 %v128, 7
    %v130 = vsub.s32 0, %v129
    %v131 = vrot.slane %v126, %v130
    %v132 = vlaneseq
    %v133 = vshrl.u32 %v132, 7
    %v134 = vsub.s32 1, %v133
    %v135 = vrot.slane %v126, %v134
    %v136 = vlaneseq
    %v137 = vshrl.u32 %v136, 7
    %v138 = vsub.s32 2, %v137
    %v139 = vrot.slane %v126, %v138
    %v140 = vlaneseq
    %v141 = vshrl.u32 %v140, 7
    %v142 = vsub.s32 3, %v141
    %v143 = vrot.slane %v126, %v142
    %v156 = vunpack.c.l.b16 %v86
    %v157 = vunpack.c.l.b16 %v87
    %v158 = vunpack.c.l.b16 %v88
    %v159 = vunpack.c.l.b16 %v89
    %v160 = vunpack.c.l.b16 %v90
    %v161 = vunpack.c.l.b16 %v91
    %v162 = vunpack.c.l.b16 %v92
    %v163 = vunpack.c.l.b16 %v93
    %v164 = vpack.c.b16 %v157, %v156
    %v165 = vpack.c.b16 %v159, %v158
    %v166 = vpack.c.b16 %v161, %v160
    %v167 = vpack.c.b16 %v163, %v162
    %v204 = vunpack.c.l.b16 %v94
    %v205 = vunpack.c.h.b16 %v94
    %v206 = vunpack.c.l.b16 %v95
    %v207 = vunpack.c.h.b16 %v95
    %v208 = vunpack.c.l.b16 %v96
    %v209 = vunpack.c.h.b16 %v96
    %v210 = vunpack.c.l.b16 %v97
    %v211 = vunpack.c.h.b16 %v97
    %v212 = vunpack.c.l.b16 %v98
    %v213 = vunpack.c.h.b16 %v98
    %v214 = vunpack.c.l.b16 %v99
    %v215 = vunpack.c.h.b16 %v99
    %v216 = vunpack.c.l.b16 %v100
    %v217 = vunpack.c.h.b16 %v100
    %v218 = vunpack.c.l.b16 %v101
    %v219 = vunpack.c.h.b16 %v101
    %v220 = vunpack.c.l.b16 %v102
    %v221 = vunpack.c.h.b16 %v102
    %v222 = vunpack.c.l.b16 %v103
    %v223 = vunpack.c.h.b16 %v103
    %v224 = vunpack.c.l.b16 %v104
    %v225 = vunpack.c.h.b16 %v104
    %v226 = vunpack.c.l.b16 %v105
    %v227 = vunpack.c.h.b16 %v105
    %v228 = vunpack.c.l.b16 %v106
    %v229 = vunpack.c.h.b16 %v106
    %v230 = vunpack.c.l.b16 %v107
    %v231 = vunpack.c.h.b16 %v107
    %v232 = vunpack.c.l.b16 %v108
    %v233 = vunpack.c.h.b16 %v108
    %v234 = vunpack.c.l.b16 %v109
    %v235 = vunpack.c.h.b16 %v109
    %v236 = vunpack.c.l.b16 %v110
    %v237 = vunpack.c.h.b16 %v110
    %v238 = vunpack.c.l.b16 %v111
    %v239 = vunpack.c.h.b16 %v111
    %v240 = vunpack.c.l.b16 %v112
    %v241 = vunpack.c.h.b16 %v112
    %v242 = vunpack.c.l.b16 %v113
    %v243 = vunpack.c.h.b16 %v113
    %v244 = vunpack.c.l.b16 %v114
    %v245 = vunpack.c.h.b16 %v114
    %v246 = vunpack.c.l.b16 %v115
    %v247 = vunpack.c.h.b16 %v115
    %v248 = vunpack.c.l.b16 %v116
    %v249 = vunpack.c.h.b16 %v116
    %v250 = vunpack.c.l.b16 %v117
    %v251 = vunpack.c.h.b16 %v117
    %v252 = vunpack.c.l.b16 %v118
    %v253 = vunpack.c.h.b16 %v118
    %v254 = vunpack.c.l.b16 %v119
    %v255 = vunpack.c.h.b16 %v119
    %v256 = vunpack.c.l.b16 %v120
    %v257 = vunpack.c.h.b16 %v120
    %v258 = vunpack.c.l.b16 %v121
    %v259 = vunpack.c.h.b16 %v121
    %v260 = vunpack.c.l.b16 %v122
    %v261 = vunpack.c.h.b16 %v122
    %v262 = vunpack.c.l.b16 %v123
    %v263 = vunpack.c.h.b16 %v123
    %v264 = vunpack.c.l.b16 %v124
    %v265 = vunpack.c.h.b16 %v124
    %v266 = vunpack.c.l.b16 %v125
    %v267 = vunpack.c.h.b16 %v125
    %v268 = vpack.c.b16 %v208, %v204
    %v269 = vpack.c.b16 %v209, %v205
    %v270 = vpack.c.b16 %v210, %v206
    %v271 = vpack.c.b16 %v211, %v207
    %v272 = vpack.c.b16 %v216, %v212
    %v273 = vpack.c.b16 %v217, %v213
    %v274 = vpack.c.b16 %v218, %v214
    %v275 = vpack.c.b16 %v219, %v215
    %v276 = vpack.c.b16 %v224, %v220
    %v277 = vpack.c.b16 %v225, %v221
    %v278 = vpack.c.b16 %v226, %v222
    %v279 = vpack.c.b16 %v227, %v223
    %v280 = vpack.c.b16 %v232, %v228
    %v281 = vpack.c.b16 %v233, %v229
    %v282 = vpack.c.b16 %v234, %v230
    %v283 = vpack.c.b16 %v235, %v231
    %v284 = vpack.c.b16 %v240, %v236
    %v285 = vpack.c.b16 %v241, %v237
    %v286 = vpack.c.b16 %v242, %v238
    %v287 = vpack.c.b16 %v243, %v239
    %v288 = vpack.c.b16 %v248, %v244
    %v289 = vpack.c.b16 %v249, %v245
    %v290 = vpack.c.b16 %v250, %v246
    %v291 = vpack.c.b16 %v251, %v247
    %v292 = vpack.c.b16 %v256, %v252
    %v293 = vpack.c.b16 %v257, %v253
    %v294 = vpack.c.b16 %v258, %v254
    %v295 = vpack.c.b16 %v259, %v255
    %v296 = vpack.c.b16 %v264, %v260
    %v297 = vpack.c.b16 %v265, %v261
    %v298 = vpack.c.b16 %v266, %v262
    %v299 = vpack.c.b16 %v267, %v263
    %332 = vmatprep.subr.bf16.mxu0 %v269
    %333 = vmatpush1.bf16.msra.mxu0 %v268
    %334 = vmatprep.subr.bf16.mxu0 %v273
    %335 = vmatpush1.bf16.msra.mxu0 %v272
    %336 = vmatprep.subr.bf16.mxu0 %v277
    %337 = vmatpush1.bf16.msra.mxu0 %v276
    %338 = vmatprep.subr.bf16.mxu0 %v281
    %339 = vmatpush1.bf16.msra.mxu0 %v280
    %340 = vmatprep.subr.bf16.mxu0 %v285
    %341 = vmatpush1.bf16.msra.mxu0 %v284
    %342 = vmatprep.subr.bf16.mxu0 %v289
    %343 = vmatpush1.bf16.msra.mxu0 %v288
    %344 = vmatprep.subr.bf16.mxu0 %v293
    %345 = vmatpush1.bf16.msra.mxu0 %v292
    %346 = vmatprep.subr.bf16.mxu0 %v297
    %347 = vmatpush1.bf16.msra.mxu0 %v296
    %348 = vmatprep.subr.bf16.mxu0 0
    %349 = vmatpush1.bf16.msra.mxu0 0
    %350 = vmatprep.subr.bf16.mxu0 0
    %351 = vmatpush1.bf16.msra.mxu0 0
    %352 = vmatprep.subr.bf16.mxu0 0
    %353 = vmatpush1.bf16.msra.mxu0 0
    %354 = vmatprep.subr.bf16.mxu0 0
    %355 = vmatpush1.bf16.msra.mxu0 0
    %356 = vmatprep.subr.bf16.mxu0 0
    %357 = vmatpush1.bf16.msra.mxu0 0
    %358 = vmatprep.subr.bf16.mxu0 0
    %359 = vmatpush1.bf16.msra.mxu0 0
    %360 = vmatprep.subr.bf16.mxu0 0
    %361 = vmatpush1.bf16.msra.mxu0 0
    %362 = vmatprep.subr.bf16.mxu0 0
    %363 = vmatpush1.bf16.msra.mxu0 0
    %364 = vmatprep.mubr.bf16.mxu0 0
    %365 = vmatmul.mubr.bf16.gmra.mrb[0].mxu0 %v164
    %v366 = vpop.f32.mrb[0].mxu0
    %v367 = vadd.f32 %v131, %v366
    %v368 = vpop.f32.mrb[0].mxu0
    %v369 = vadd.f32 %v135, %v368
    %v370 = vpop.f32.mrb[0].mxu0
    %v371 = vadd.f32 %v131, %v370
    %v372 = vpop.f32.mrb[0].mxu0
    %v373 = vadd.f32 %v135, %v372
    %374 = vmatprep.mubr.bf16.mxu0 0
    %375 = vmatmul.mubr.bf16.gmra.mrb[0].mxu0 %v165
    %v376 = vpop.f32.mrb[0].mxu0
    %v377 = vadd.f32 %v131, %v376
    %v378 = vpop.f32.mrb[0].mxu0
    %v379 = vadd.f32 %v135, %v378
    %v380 = vpop.f32.mrb[0].mxu0
    %v381 = vadd.f32 %v131, %v380
    %v382 = vpop.f32.mrb[0].mxu0
    %v383 = vadd.f32 %v135, %v382
    %384 = vmatprep.mubr.bf16.mxu0 0
    %385 = vmatmul.mubr.bf16.gmra.mrb[0].mxu0 %v166
    %v386 = vpop.f32.mrb[0].mxu0
    %v387 = vadd.f32 %v131, %v386
    %v388 = vpop.f32.mrb[0].mxu0
    %v389 = vadd.f32 %v135, %v388
    %v390 = vpop.f32.mrb[0].mxu0
    %v391 = vadd.f32 %v131, %v390
    %v392 = vpop.f32.mrb[0].mxu0
    %v393 = vadd.f32 %v135, %v392
    %394 = vmatprep.mubr.bf16.mxu0 0
    %395 = vmatmul.mubr.bf16.gmra.mrb[0].mxu0 %v167
    %v396 = vpop.f32.mrb[0].mxu0
    %v397 = vadd.f32 %v131, %v396
    %v398 = vpop.f32.mrb[0].mxu0
    %v399 = vadd.f32 %v135, %v398
    %v400 = vpop.f32.mrb[0].mxu0
    %v401 = vadd.f32 %v131, %v400
    %v402 = vpop.f32.mrb[0].mxu0
    %v403 = vadd.f32 %v135, %v402
    %404 = vdwg.mxu0
    %405 = vmatprep.subr.bf16.mxu0 %v271
    %406 = vmatpush1.bf16.msra.mxu0 %v270
    %407 = vmatprep.subr.bf16.mxu0 %v275
    %408 = vmatpush1.bf16.msra.mxu0 %v274
    %409 = vmatprep.subr.bf16.mxu0 %v279
    %410 = vmatpush1.bf16.msra.mxu0 %v278
    %411 = vmatprep.subr.bf16.mxu0 %v283
    %412 = vmatpush1.bf16.msra.mxu0 %v282
    %413 = vmatprep.subr.bf16.mxu0 %v287
    %414 = vmatpush1.bf16.msra.mxu0 %v286
    %415 = vmatprep.subr.bf16.mxu0 %v291
    %416 = vmatpush1.bf16.msra.mxu0 %v290
    %417 = vmatprep.subr.bf16.mxu0 %v295
    %418 = vmatpush1.bf16.msra.mxu0 %v294
    %419 = vmatprep.subr.bf16.mxu0 %v299
    %420 = vmatpush1.bf16.msra.mxu0 %v298
    %421 = vmatprep.subr.bf16.mxu0 0
    %422 = vmatpush1.bf16.msra.mxu0 0
    %423 = vmatprep.subr.bf16.mxu0 0
    %424 = vmatpush1.bf16.msra.mxu0 0
    %425 = vmatprep.subr.bf16.mxu0 0
    %426 = vmatpush1.bf16.msra.mxu0 0
    %427 = vmatprep.subr.bf16.mxu0 0
    %428 = vmatpush1.bf16.msra.mxu0 0
    %429 = vmatprep.subr.bf16.mxu0 0
    %430 = vmatpush1.bf16.msra.mxu0 0
    %431 = vmatprep.subr.bf16.mxu0 0
    %432 = vmatpush1.bf16.msra.mxu0 0
    %433 = vmatprep.subr.bf16.mxu0 0
    %434 = vmatpush1.bf16.msra.mxu0 0
    %435 = vmatprep.subr.bf16.mxu0 0
    %436 = vmatpush1.bf16.msra.mxu0 0
    %437 = vmatprep.mubr.bf16.mxu0 0
    %438 = vmatmul.mubr.bf16.gmra.mrb[0].mxu0 %v164
    %v439 = vpop.f32.mrb[0].mxu0
    %v440 = vadd.f32 %v139, %v439
    %v441 = vpop.f32.mrb[0].mxu0
    %v442 = vadd.f32 %v143, %v441
    %v443 = vpop.f32.mrb[0].mxu0
    %v444 = vadd.f32 %v139, %v443
    %v445 = vpop.f32.mrb[0].mxu0
    %v446 = vadd.f32 %v143, %v445
    %447 = vmatprep.mubr.bf16.mxu0 0
    %448 = vmatmul.mubr.bf16.gmra.mrb[0].mxu0 %v165
    %v449 = vpop.f32.mrb[0].mxu0
    %v450 = vadd.f32 %v139, %v449
    %v451 = vpop.f32.mrb[0].mxu0
    %v452 = vadd.f32 %v143, %v451
    %v453 = vpop.f32.mrb[0].mxu0
    %v454 = vadd.f32 %v139, %v453
    %v455 = vpop.f32.mrb[0].mxu0
    %v456 = vadd.f32 %v143, %v455
    %457 = vmatprep.mubr.bf16.mxu0 0
    %458 = vmatmul.mubr.bf16.gmra.mrb[0].mxu0 %v166
    %v459 = vpop.f32.mrb[0].mxu0
    %v460 = vadd.f32 %v139, %v459
    %v461 = vpop.f32.mrb[0].mxu0
    %v462 = vadd.f32 %v143, %v461
    %v463 = vpop.f32.mrb[0].mxu0
    %v464 = vadd.f32 %v139, %v463
    %v465 = vpop.f32.mrb[0].mxu0
    %v466 = vadd.f32 %v143, %v465
    %467 = vmatprep.mubr.bf16.mxu0 0
    %468 = vmatmul.mubr.bf16.gmra.mrb[0].mxu0 %v167
    %v469 = vpop.f32.mrb[0].mxu0
    %v470 = vadd.f32 %v139, %v469
    %v471 = vpop.f32.mrb[0].mxu0
    %v472 = vadd.f32 %v143, %v471
    %v473 = vpop.f32.mrb[0].mxu0
    %v474 = vadd.f32 %v139, %v473
    %v475 = vpop.f32.mrb[0].mxu0
    %v476 = vadd.f32 %v143, %v475
    %477 = vdwg.mxu0
    %478 = vst [vmem:[#allocation2] sm:$0xff] %v367
    %479 = vst [vmem:[#allocation2 + $0x8] sm:$0xff] %v369
    %480 = vst [vmem:[#allocation2 + $0x10] sm:$0xff] %v440
    %481 = vst [vmem:[#allocation2 + $0x18] sm:$0xff] %v442
    %482 = vst [vmem:[#allocation2 + $0x20] sm:$0xff] %v371
    %483 = vst [vmem:[#allocation2 + $0x28] sm:$0xff] %v373
    %484 = vst [vmem:[#allocation2 + $0x30] sm:$0xff] %v444
    %485 = vst [vmem:[#allocation2 + $0x38] sm:$0xff] %v446
    %486 = vst [vmem:[#allocation2 + $0x40] sm:$0xff] %v377
    %487 = vst [vmem:[#allocation2 + $0x48] sm:$0xff] %v379
    %488 = vst [vmem:[#allocation2 + $0x50] sm:$0xff] %v450
    %489 = vst [vmem:[#allocation2 + $0x58] sm:$0xff] %v452
    %490 = vst [vmem:[#allocation2 + $0x60] sm:$0xff] %v381
    %491 = vst [vmem:[#allocation2 + $0x68] sm:$0xff] %v383
    %492 = vst [vmem:[#allocation2 + $0x70] sm:$0xff] %v454
    %493 = vst [vmem:[#allocation2 + $0x78] sm:$0xff] %v456
    %494 = vst [vmem:[#allocation2 + $0x80] sm:$0xff] %v387
    %495 = vst [vmem:[#allocation2 + $0x88] sm:$0xff] %v389
    %496 = vst [vmem:[#allocation2 + $0x90] sm:$0xff] %v460
    %497 = vst [vmem:[#allocation2 + $0x98] sm:$0xff] %v462
    %498 = vst [vmem:[#allocation2 + $0xa0] sm:$0xff] %v391
    %499 = vst [vmem:[#allocation2 + $0xa8] sm:$0xff] %v393
    %500 = vst [vmem:[#allocation2 + $0xb0] sm:$0xff] %v464
    %501 = vst [vmem:[#allocation2 + $0xb8] sm:$0xff] %v466
    %502 = vst [vmem:[#allocation2 + $0xc0] sm:$0xff] %v397
    %503 = vst [vmem:[#allocation2 + $0xc8] sm:$0xff] %v399
    %504 = vst [vmem:[#allocation2 + $0xd0] sm:$0xff] %v470
    %505 = vst [vmem:[#allocation2 + $0xd8] sm:$0xff] %v472
    %506 = vst [vmem:[#allocation2 + $0xe0] sm:$0xff] %v401
    %507 = vst [vmem:[#allocation2 + $0xe8] sm:$0xff] %v403
    %508 = vst [vmem:[#allocation2 + $0xf0] sm:$0xff] %v474
    %509 = vst [vmem:[#allocation2 + $0xf8] sm:$0xff] %v476
    %v510 = vld [vmem:[#allocation3] sm:$0xff]
    %v511 = vld [vmem:[#allocation4] sm:$0xff]
    %s512 = smul.u32 0, 4
    %s513 = smul.addr %s512, 8
    %s514 = scalar_lea.vmem [#allocation2], %s513
    %v515 = vld [vmem:[%s514] sm:$0xff]
    %v516 = vld [vmem:[%s514 + $0x8] sm:$0xff]
    %v517 = vld [vmem:[%s514 + $0x10] sm:$0xff]
    %v518 = vld [vmem:[%s514 + $0x18] sm:$0xff]
    %v519 = vpack.c.bf16 %v510, %v510
    %v520 = vld [vmem:[#allocation10] sm:$0xff]
    %v521 = vld [vmem:[#allocation10 + $0x8] sm:$0xff]
    %v522 = vld [vmem:[#allocation10 + $0x10] sm:$0xff]
    %v523 = vld [vmem:[#allocation10 + $0x18] sm:$0xff]
    %v524 = vld [vmem:[#allocation10 + $0x20] sm:$0xff]
    %v525 = vld [vmem:[#allocation10 + $0x28] sm:$0xff]
    %v526 = vld [vmem:[#allocation10 + $0x30] sm:$0xff]
    %v527 = vld [vmem:[#allocation10 + $0x38] sm:$0xff]
    %v528 = vld [vmem:[#allocation10 + $0x40] sm:$0xff]
    %v529 = vld [vmem:[#allocation10 + $0x48] sm:$0xff]
    %v530 = vld [vmem:[#allocation10 + $0x50] sm:$0xff]
    %v531 = vld [vmem:[#allocation10 + $0x58] sm:$0xff]
    %v532 = vld [vmem:[#allocation10 + $0x60] sm:$0xff]
    %v533 = vld [vmem:[#allocation10 + $0x68] sm:$0xff]
    %v534 = vld [vmem:[#allocation10 + $0x70] sm:$0xff]
    %v535 = vld [vmem:[#allocation10 + $0x78] sm:$0xff]
    %v536 = vld [vmem:[#allocation10 + $0x80] sm:$0xff]
    %v537 = vld [vmem:[#allocation10 + $0x88] sm:$0xff]
    %v538 = vld [vmem:[#allocation10 + $0x90] sm:$0xff]
    %v539 = vld [vmem:[#allocation10 + $0x98] sm:$0xff]
    %v540 = vld [vmem:[#allocation10 + $0xa0] sm:$0xff]
    %v541 = vld [vmem:[#allocation10 + $0xa8] sm:$0xff]
    %v542 = vld [vmem:[#allocation10 + $0xb0] sm:$0xff]
    %v543 = vld [vmem:[#allocation10 + $0xb8] sm:$0xff]
    %v544 = vld [vmem:[#allocation10 + $0xc0] sm:$0xff]
    %v545 = vld [vmem:[#allocation10 + $0xc8] sm:$0xff]
    %v546 = vld [vmem:[#allocation10 + $0xd0] sm:$0xff]
    %v547 = vld [vmem:[#allocation10 + $0xd8] sm:$0xff]
    %v548 = vld [vmem:[#allocation10 + $0xe0] sm:$0xff]
    %v549 = vld [vmem:[#allocation10 + $0xe8] sm:$0xff]
    %v550 = vld [vmem:[#allocation10 + $0xf0] sm:$0xff]
    %v551 = vld [vmem:[#allocation10 + $0xf8] sm:$0xff]
    %v584 = vunpack.c.l.b16 %v520
    %v585 = vunpack.c.h.b16 %v520
    %v586 = vunpack.c.l.b16 %v521
    %v587 = vunpack.c.h.b16 %v521
    %v588 = vunpack.c.l.b16 %v522
    %v589 = vunpack.c.h.b16 %v522
    %v590 = vunpack.c.l.b16 %v523
    %v591 = vunpack.c.h.b16 %v523
    %v592 = vunpack.c.l.b16 %v524
    %v593 = vunpack.c.h.b16 %v524
    %v594 = vunpack.c.l.b16 %v525
    %v595 = vunpack.c.h.b16 %v525
    %v596 = vunpack.c.l.b16 %v526
    %v597 = vunpack.c.h.b16 %v526
    %v598 = vunpack.c.l.b16 %v527
    %v599 = vunpack.c.h.b16 %v527
    %v600 = vunpack.c.l.b16 %v528
    %v601 = vunpack.c.h.b16 %v528
    %v602 = vunpack.c.l.b16 %v529
    %v603 = vunpack.c.h.b16 %v529
    %v604 = vunpack.c.l.b16 %v530
    %v605 = vunpack.c.h.b16 %v530
    %v606 = vunpack.c.l.b16 %v531
    %v607 = vunpack.c.h.b16 %v531
    %v608 = vunpack.c.l.b16 %v532
    %v609 = vunpack.c.h.b16 %v532
    %v610 = vunpack.c.l.b16 %v533
    %v611 = vunpack.c.h.b16 %v533
    %v612 = vunpack.c.l.b16 %v534
    %v613 = vunpack.c.h.b16 %v534
    %v614 = vunpack.c.l.b16 %v535
    %v615 = vunpack.c.h.b16 %v535
    %v616 = vunpack.c.l.b16 %v536
    %v617 = vunpack.c.h.b16 %v536
    %v618 = vunpack.c.l.b16 %v537
    %v619 = vunpack.c.h.b16 %v537
    %v620 = vunpack.c.l.b16 %v538
    %v621 = vunpack.c.h.b16 %v538
    %v622 = vunpack.c.l.b16 %v539
    %v623 = vunpack.c.h.b16 %v539
    %v624 = vunpack.c.l.b16 %v540
    %v625 = vunpack.c.h.b16 %v540
    %v626 = vunpack.c.l.b16 %v541
    %v627 = vunpack.c.h.b16 %v541
    %v628 = vunpack.c.l.b16 %v542
    %v629 = vunpack.c.h.b16 %v542
    %v630 = vunpack.c.l.b16 %v543
    %v631 = vunpack.c.h.b16 %v543
    %v632 = vunpack.c.l.b16 %v544
    %v633 = vunpack.c.h.b16 %v544
    %v634 = vunpack.c.l.b16 %v545
    %v635 = vunpack.c.h.b16 %v545
    %v636 = vunpack.c.l.b16 %v546
    %v637 = vunpack.c.h.b16 %v546
    %v638 = vunpack.c.l.b16 %v547
    %v639 = vunpack.c.h.b16 %v547
    %v640 = vunpack.c.l.b16 %v548
    %v641 = vunpack.c.h.b16 %v548
    %v642 = vunpack.c.l.b16 %v549
    %v643 = vunpack.c.h.b16 %v549
    %v644 = vunpack.c.l.b16 %v550
    %v645 = vunpack.c.h.b16 %v550
    %v646 = vunpack.c.l.b16 %v551
    %v647 = vunpack.c.h.b16 %v551
    %v648 = vpack.c.b16 %v588, %v584
    %v649 = vpack.c.b16 %v589, %v585
    %v650 = vpack.c.b16 %v590, %v586
    %v651 = vpack.c.b16 %v591, %v587
    %v652 = vpack.c.b16 %v596, %v592
    %v653 = vpack.c.b16 %v597, %v593
    %v654 = vpack.c.b16 %v598, %v594
    %v655 = vpack.c.b16 %v599, %v595
    %v656 = vpack.c.b16 %v604, %v600
    %v657 = vpack.c.b16 %v605, %v601
    %v658 = vpack.c.b16 %v606, %v602
    %v659 = vpack.c.b16 %v607, %v603
    %v660 = vpack.c.b16 %v612, %v608
    %v661 = vpack.c.b16 %v613, %v609
    %v662 = vpack.c.b16 %v614, %v610
    %v663 = vpack.c.b16 %v615, %v611
    %v664 = vpack.c.b16 %v620, %v616
    %v665 = vpack.c.b16 %v621, %v617
    %v666 = vpack.c.b16 %v622, %v618
    %v667 = vpack.c.b16 %v623, %v619
    %v668 = vpack.c.b16 %v628, %v624
    %v669 = vpack.c.b16 %v629, %v625
    %v670 = vpack.c.b16 %v630, %v626
    %v671 = vpack.c.b16 %v631, %v627
    %v672 = vpack.c.b16 %v636, %v632
    %v673 = vpack.c.b16 %v637, %v633
    %v674 = vpack.c.b16 %v638, %v634
    %v675 = vpack.c.b16 %v639, %v635
    %v676 = vpack.c.b16 %v644, %v640
    %v677 = vpack.c.b16 %v645, %v641
    %v678 = vpack.c.b16 %v646, %v642
    %v679 = vpack.c.b16 %v647, %v643
    %712 = vmatprep.subr.bf16.mxu0 %v649
    %713 = vmatpush1.bf16.msra.mxu0 %v648
    %714 = vmatprep.subr.bf16.mxu0 %v653
    %715 = vmatpush1.bf16.msra.mxu0 %v652
    %716 = vmatprep.subr.bf16.mxu0 %v657
    %717 = vmatpush1.bf16.msra.mxu0 %v656
    %718 = vmatprep.subr.bf16.mxu0 %v661
    %719 = vmatpush1.bf16.msra.mxu0 %v660
    %720 = vmatprep.subr.bf16.mxu0 %v665
    %721 = vmatpush1.bf16.msra.mxu0 %v664
    %722 = vmatprep.subr.bf16.mxu0 %v669
    %723 = vmatpush1.bf16.msra.mxu0 %v668
    %724 = vmatprep.subr.bf16.mxu0 %v673
    %725 = vmatpush1.bf16.msra.mxu0 %v672
    %726 = vmatprep.subr.bf16.mxu0 %v677
    %727 = vmatpush1.bf16.msra.mxu0 %v676
    %728 = vmatprep.subr.bf16.mxu0 0
    %729 = vmatpush1.bf16.msra.mxu0 0
    %730 = vmatprep.subr.bf16.mxu0 0
    %731 = vmatpush1.bf16.msra.mxu0 0
    %732 = vmatprep.subr.bf16.mxu0 0
    %733 = vmatpush1.bf16.msra.mxu0 0
    %734 = vmatprep.subr.bf16.mxu0 0
    %735 = vmatpush1.bf16.msra.mxu0 0
    %736 = vmatprep.subr.bf16.mxu0 0
    %737 = vmatpush1.bf16.msra.mxu0 0
    %738 = vmatprep.subr.bf16.mxu0 0
    %739 = vmatpush1.bf16.msra.mxu0 0
    %740 = vmatprep.subr.bf16.mxu0 0
    %741 = vmatpush1.bf16.msra.mxu0 0
    %742 = vmatprep.subr.bf16.mxu0 0
    %743 = vmatpush1.bf16.msra.mxu0 0
    %744 = vmatprep.mubr.bf16.mxu0 0
    %745 = vmatmul.mubr.bf16.gmra.mrb[0].mxu0 %v519
    %v746 = vpop.f32.mrb[0].mxu0
    %v747 = vadd.f32 0.0, %v746
    %v748 = vpop.f32.mrb[0].mxu0
    %v749 = vadd.f32 0.0, %v748
    %v750 = vpop.f32.mrb[0].mxu0
    %v751 = vpop.f32.mrb[0].mxu0
    %752 = vdwg.mxu0
    %753 = vmatprep.subr.bf16.mxu0 %v651
    %754 = vmatpush1.bf16.msra.mxu0 %v650
    %755 = vmatprep.subr.bf16.mxu0 %v655
    %756 = vmatpush1.bf16.msra.mxu0 %v654
    %757 = vmatprep.subr.bf16.mxu0 %v659
    %758 = vmatpush1.bf16.msra.mxu0 %v658
    %759 = vmatprep.subr.bf16.mxu0 %v663
    %760 = vmatpush1.bf16.msra.mxu0 %v662
    %761 = vmatprep.subr.bf16.mxu0 %v667
    %762 = vmatpush1.bf16.msra.mxu0 %v666
    %763 = vmatprep.subr.bf16.mxu0 %v671
    %764 = vmatpush1.bf16.msra.mxu0 %v670
    %765 = vmatprep.subr.bf16.mxu0 %v675
    %766 = vmatpush1.bf16.msra.mxu0 %v674
    %767 = vmatprep.subr.bf16.mxu0 %v679
    %768 = vmatpush1.bf16.msra.mxu0 %v678
    %769 = vmatprep.subr.bf16.mxu0 0
    %770 = vmatpush1.bf16.msra.mxu0 0
    %771 = vmatprep.subr.bf16.mxu0 0
    %772 = vmatpush1.bf16.msra.mxu0 0
    %773 = vmatprep.subr.bf16.mxu0 0
    %774 = vmatpush1.bf16.msra.mxu0 0
    %775 = vmatprep.subr.bf16.mxu0 0
    %776 = vmatpush1.bf16.msra.mxu0 0
    %777 = vmatprep.subr.bf16.mxu0 0
    %778 = vmatpush1.bf16.msra.mxu0 0
    %779 = vmatprep.subr.bf16.mxu0 0
    %780 = vmatpush1.bf16.msra.mxu0 0
    %781 = vmatprep.subr.bf16.mxu0 0
    %782 = vmatpush1.bf16.msra.mxu0 0
    %783 = vmatprep.subr.bf16.mxu0 0
    %784 = vmatpush1.bf16.msra.mxu0 0
    %785 = vmatprep.mubr.bf16.mxu0 0
    %786 = vmatmul.mubr.bf16.gmra.mrb[0].mxu0 %v519
    %v787 = vpop.f32.mrb[0].mxu0
    %v788 = vadd.f32 0.0, %v787
    %v789 = vpop.f32.mrb[0].mxu0
    %v790 = vadd.f32 0.0, %v789
    %v791 = vpop.f32.mrb[0].mxu0
    %v792 = vpop.f32.mrb[0].mxu0
    %793 = vdwg.mxu0
    %v794 = vadd.f32 %v515, %v747
    %v795 = vadd.f32 %v516, %v749
    %v796 = vadd.f32 %v517, %v788
    %v797 = vadd.f32 %v518, %v790
    %v798 = vmul.f32 %v794, 0.5
    %v799 = vtanh.pop %v798
    %v800 = vadd.f32 %v799, 1.0
    %v801 = vmul.f32 %v800, 0.5
    %v802 = vmul.f32 %v795, 0.5
    %v803 = vtanh.pop %v802
    %v804 = vadd.f32 %v803, 1.0
    %v805 = vmul.f32 %v804, 0.5
    %v806 = vtanh.pop %v796
    %v807 = vmul.f32 %v797, 0.5
    %v808 = vtanh.pop %v807
    %v809 = vadd.f32 %v808, 1.0
    %v810 = vmul.f32 %v809, 0.5
    %v811 = vmul.f32 %v805, %v511
    %v812 = vmul.f32 %v801, %v806
    %v813 = vadd.f32 %v811, %v812
    %v814 = vtanh.pop %v813
    %v815 = vmul.f32 %v810, %v814
    %s816 = smul.u32 1, 4
    %s817 = smul.addr %s816, 8
    %s818 = scalar_lea.vmem [#allocation2], %s817
    %v819 = vld [vmem:[%s818] sm:$0xff]
    %v820 = vld [vmem:[%s818 + $0x8] sm:$0xff]
    %v821 = vld [vmem:[%s818 + $0x10] sm:$0xff]
    %v822 = vld [vmem:[%s818 + $0x18] sm:$0xff]
    %v823 = vpack.c.bf16 %v815, %v815
    %824 = vmatprep.subr.bf16.mxu0 %v649
    %825 = vmatpush1.bf16.msra.mxu0 %v648
    %826 = vmatprep.subr.bf16.mxu0 %v653
    %827 = vmatpush1.bf16.msra.mxu0 %v652
    %828 = vmatprep.subr.bf16.mxu0 %v657
    %829 = vmatpush1.bf16.msra.mxu0 %v656
    %830 = vmatprep.subr.bf16.mxu0 %v661
    %831 = vmatpush1.bf16.msra.mxu0 %v660
    %832 = vmatprep.subr.bf16.mxu0 %v665
    %833 = vmatpush1.bf16.msra.mxu0 %v664
    %834 = vmatprep.subr.bf16.mxu0 %v669
    %835 = vmatpush1.bf16.msra.mxu0 %v668
    %836 = vmatprep.subr.bf16.mxu0 %v673
    %837 = vmatpush1.bf16.msra.mxu0 %v672
    %838 = vmatprep.subr.bf16.mxu0 %v677
    %839 = vmatpush1.bf16.msra.mxu0 %v676
    %840 = vmatprep.subr.bf16.mxu0 0
    %841 = vmatpush1.bf16.msra.mxu0 0
    %842 = vmatprep.subr.bf16.mxu0 0
    %843 = vmatpush1.bf16.msra.mxu0 0
    %844 = vmatprep.subr.bf16.mxu0 0
    %845 = vmatpush1.bf16.msra.mxu0 0
    %846 = vmatprep.subr.bf16.mxu0 0
    %847 = vmatpush1.bf16.msra.mxu0 0
    %848 = vmatprep.subr.bf16.mxu0 0
    %849 = vmatpush1.bf16.msra.mxu0 0
    %850 = vmatprep.subr.bf16.mxu0 0
    %851 = vmatpush1.bf16.msra.mxu0 0
    %852 = vmatprep.subr.bf16.mxu0 0
    %853 = vmatpush1.bf16.msra.mxu0 0
    %854 = vmatprep.subr.bf16.mxu0 0
    %855 = vmatpush1.bf16.msra.mxu0 0
    %856 = vmatprep.mubr.bf16.mxu0 0
    %857 = vmatmul.mubr.bf16.gmra.mrb[0].mxu0 %v823
    %v858 = vpop.f32.mrb[0].mxu0
    %v859 = vadd.f32 0.0, %v858
    %v860 = vpop.f32.mrb[0].mxu0
    %v861 = vadd.f32 0.0, %v860
    %v862 = vpop.f32.mrb[0].mxu0
    %v863 = vpop.f32.mrb[0].mxu0
    %864 = vdwg.mxu0
    %865 = vmatprep.subr.bf16.mxu0 %v651
    %866 = vmatpush1.bf16.msra.mxu0 %v650
    %867 = vmatprep.subr.bf16.mxu0 %v655
    %868 = vmatpush1.bf16.msra.mxu0 %v654
    %869 = vmatprep.subr.bf16.mxu0 %v659
    %870 = vmatpush1.bf16.msra.mxu0 %v658
    %871 = vmatprep.subr.bf16.mxu0 %v663
    %872 = vmatpush1.bf16.msra.mxu0 %v662
    %873 = vmatprep.subr.bf16.mxu0 %v667
    %874 = vmatpush1.bf16.msra.mxu0 %v666
    %875 = vmatprep.subr.bf16.mxu0 %v671
    %876 = vmatpush1.bf16.msra.mxu0 %v670
    %877 = vmatprep.subr.bf16.mxu0 %v675
    %878 = vmatpush1.bf16.msra.mxu0 %v674
    %879 = vmatprep.subr.bf16.mxu0 %v679
    %880 = vmatpush1.bf16.msra.mxu0 %v678
    %881 = vmatprep.subr.bf16.mxu0 0
    %882 = vmatpush1.bf16.msra.mxu0 0
    %883 = vmatprep.subr.bf16.mxu0 0
    %884 = vmatpush1.bf16.msra.mxu0 0
    %885 = vmatprep.subr.bf16.mxu0 0
    %886 = vmatpush1.bf16.msra.mxu0 0
    %887 = vmatprep.subr.bf16.mxu0 0
    %888 = vmatpush1.bf16.msra.mxu0 0
    %889 = vmatprep.subr.bf16.mxu0 0
    %890 = vmatpush1.bf16.msra.mxu0 0
    %891 = vmatprep.subr.bf16.mxu0 0
    %892 = vmatpush1.bf16.msra.mxu0 0
    %893 = vmatprep.subr.bf16.mxu0 0
    %894 = vmatpush1.bf16.msra.mxu0 0
    %895 = vmatprep.subr.bf16.mxu0 0
    %896 = vmatpush1.bf16.msra.mxu0 0
    %897 = vmatprep.mubr.bf16.mxu0 0
    %898 = vmatmul.mubr.bf16.gmra.mrb[0].mxu0 %v823
    %v899 = vpop.f32.mrb[0].mxu0
    %v900 = vadd.f32 0.0, %v899
    %v901 = vpop.f32.mrb[0].mxu0
    %v902 = vadd.f32 0.0, %v901
    %v903 = vpop.f32.mrb[0].mxu0
    %v904 = vpop.f32.mrb[0].mxu0
    %905 = vdwg.mxu0
    %v906 = vadd.f32 %v819, %v859
    %v907 = vadd.f32 %v820, %v861
    %v908 = vadd.f32 %v821, %v900
    %v909 = vadd.f32 %v822, %v902
    %v910 = vmul.f32 %v906, 0.5
    %v911 = vtanh.pop %v910
    %v912 = vadd.f32 %v911, 1.0
    %v913 = vmul.f32 %v912, 0.5
    %v914 = vmul.f32 %v907, 0.5
    %v915 = vtanh.pop %v914
    %v916 = vadd.f32 %v915, 1.0
    %v917 = vmul.f32 %v916, 0.5
    %v918 = vtanh.pop %v908
    %v919 = vmul.f32 %v909, 0.5
    %v920 = vtanh.pop %v919
    %v921 = vadd.f32 %v920, 1.0
    %v922 = vmul.f32 %v921, 0.5
    %v923 = vmul.f32 %v917, %v813
    %v924 = vmul.f32 %v913, %v918
    %v925 = vadd.f32 %v923, %v924
    %v926 = vtanh.pop %v925
    %v927 = vmul.f32 %v922, %v926
    %s928 = smul.u32 2, 4
    %s929 = smul.addr %s928, 8
    %s930 = scalar_lea.vmem [#allocation2], %s929
    %v931 = vld [vmem:[%s930] sm:$0xff]
    %v932 = vld [vmem:[%s930 + $0x8] sm:$0xff]
    %v933 = vld [vmem:[%s930 + $0x10] sm:$0xff]
    %v934 = vld [vmem:[%s930 + $0x18] sm:$0xff]
    %v935 = vpack.c.bf16 %v927, %v927
    %936 = vmatprep.subr.bf16.mxu0 %v649
    %937 = vmatpush1.bf16.msra.mxu0 %v648
    %938 = vmatprep.subr.bf16.mxu0 %v653
    %939 = vmatpush1.bf16.msra.mxu0 %v652
    %940 = vmatprep.subr.bf16.mxu0 %v657
    %941 = vmatpush1.bf16.msra.mxu0 %v656
    %942 = vmatprep.subr.bf16.mxu0 %v661
    %943 = vmatpush1.bf16.msra.mxu0 %v660
    %944 = vmatprep.subr.bf16.mxu0 %v665
    %945 = vmatpush1.bf16.msra.mxu0 %v664
    %946 = vmatprep.subr.bf16.mxu0 %v669
    %947 = vmatpush1.bf16.msra.mxu0 %v668
    %948 = vmatprep.subr.bf16.mxu0 %v673
    %949 = vmatpush1.bf16.msra.mxu0 %v672
    %950 = vmatprep.subr.bf16.mxu0 %v677
    %951 = vmatpush1.bf16.msra.mxu0 %v676
    %952 = vmatprep.subr.bf16.mxu0 0
    %953 = vmatpush1.bf16.msra.mxu0 0
    %954 = vmatprep.subr.bf16.mxu0 0
    %955 = vmatpush1.bf16.msra.mxu0 0
    %956 = vmatprep.subr.bf16.mxu0 0
    %957 = vmatpush1.bf16.msra.mxu0 0
    %958 = vmatprep.subr.bf16.mxu0 0
    %959 = vmatpush1.bf16.msra.mxu0 0
    %960 = vmatprep.subr.bf16.mxu0 0
    %961 = vmatpush1.bf16.msra.mxu0 0
    %962 = vmatprep.subr.bf16.mxu0 0
    %963 = vmatpush1.bf16.msra.mxu0 0
    %964 = vmatprep.subr.bf16.mxu0 0
    %965 = vmatpush1.bf16.msra.mxu0 0
    %966 = vmatprep.subr.bf16.mxu0 0
    %967 = vmatpush1.bf16.msra.mxu0 0
    %968 = vmatprep.mubr.bf16.mxu0 0
    %969 = vmatmul.mubr.bf16.gmra.mrb[0].mxu0 %v935
    %v970 = vpop.f32.mrb[0].mxu0
    %v971 = vadd.f32 0.0, %v970
    %v972 = vpop.f32.mrb[0].mxu0
    %v973 = vadd.f32 0.0, %v972
    %v974 = vpop.f32.mrb[0].mxu0
    %v975 = vpop.f32.mrb[0].mxu0
    %976 = vdwg.mxu0
    %977 = vmatprep.subr.bf16.mxu0 %v651
    %978 = vmatpush1.bf16.msra.mxu0 %v650
    %979 = vmatprep.subr.bf16.mxu0 %v655
    %980 = vmatpush1.bf16.msra.mxu0 %v654
    %981 = vmatprep.subr.bf16.mxu0 %v659
    %982 = vmatpush1.bf16.msra.mxu0 %v658
    %983 = vmatprep.subr.bf16.mxu0 %v663
    %984 = vmatpush1.bf16.msra.mxu0 %v662
    %985 = vmatprep.subr.bf16.mxu0 %v667
    %986 = vmatpush1.bf16.msra.mxu0 %v666
    %987 = vmatprep.subr.bf16.mxu0 %v671
    %988 = vmatpush1.bf16.msra.mxu0 %v670
    %989 = vmatprep.subr.bf16.mxu0 %v675
    %990 = vmatpush1.bf16.msra.mxu0 %v674
    %991 = vmatprep.subr.bf16.mxu0 %v679
    %992 = vmatpush1.bf16.msra.mxu0 %v678
    %993 = vmatprep.subr.bf16.mxu0 0
    %994 = vmatpush1.bf16.msra.mxu0 0
    %995 = vmatprep.subr.bf16.mxu0 0
    %996 = vmatpush1.bf16.msra.mxu0 0
    %997 = vmatprep.subr.bf16.mxu0 0
    %998 = vmatpush1.bf16.msra.mxu0 0
    %999 = vmatprep.subr.bf16.mxu0 0
    %1000 = vmatpush1.bf16.msra.mxu0 0
    %1001 = vmatprep.subr.bf16.mxu0 0
    %1002 = vmatpush1.bf16.msra.mxu0 0
    %1003 = vmatprep.subr.bf16.mxu0 0
    %1004 = vmatpush1.bf16.msra.mxu0 0
    %1005 = vmatprep.subr.bf16.mxu0 0
    %1006 = vmatpush1.bf16.msra.mxu0 0
    %1007 = vmatprep.subr.bf16.mxu0 0
    %1008 = vmatpush1.bf16.msra.mxu0 0
    %1009 = vmatprep.mubr.bf16.mxu0 0
    %1010 = vmatmul.mubr.bf16.gmra.mrb[0].mxu0 %v935
    %v1011 = vpop.f32.mrb[0].mxu0
    %v1012 = vadd.f32 0.0, %v1011
    %v1013 = vpop.f32.mrb[0].mxu0
    %v1014 = vadd.f32 0.0, %v1013
    %v1015 = vpop.f32.mrb[0].mxu0
    %v1016 = vpop.f32.mrb[0].mxu0
    %1017 = vdwg.mxu0
    %v1018 = vadd.f32 %v931, %v971
    %v1019 = vadd.f32 %v932, %v973
    %v1020 = vadd.f32 %v933, %v1012
    %v1021 = vadd.f32 %v934, %v1014
    %v1022 = vmul.f32 %v1018, 0.5
    %v1023 = vtanh.pop %v1022
    %v1024 = vadd.f32 %v1023, 1.0
    %v1025 = vmul.f32 %v1024, 0.5
    %v1026 = vmul.f32 %v1019, 0.5
    %v1027 = vtanh.pop %v1026
    %v1028 = vadd.f32 %v1027, 1.0
    %v1029 = vmul.f32 %v1028, 0.5
    %v1030 = vtanh.pop %v1020
    %v1031 = vmul.f32 %v1021, 0.5
    %v1032 = vtanh.pop %v1031
    %v1033 = vadd.f32 %v1032, 1.0
    %v1034 = vmul.f32 %v1033, 0.5
    %v1035 = vmul.f32 %v1029, %v925
    %v1036 = vmul.f32 %v1025, %v1030
    %v1037 = vadd.f32 %v1035, %v1036
    %v1038 = vtanh.pop %v1037
    %v1039 = vmul.f32 %v1034, %v1038
    %s1040 = smul.u32 3, 4
    %s1041 = smul.addr %s1040, 8
    %s1042 = scalar_lea.vmem [#allocation2], %s1041
    %v1043 = vld [vmem:[%s1042] sm:$0xff]
    %v1044 = vld [vmem:[%s1042 + $0x8] sm:$0xff]
    %v1045 = vld [vmem:[%s1042 + $0x10] sm:$0xff]
    %v1046 = vld [vmem:[%s1042 + $0x18] sm:$0xff]
    %v1047 = vpack.c.bf16 %v1039, %v1039
    %1048 = vmatprep.subr.bf16.mxu0 %v649
    %1049 = vmatpush1.bf16.msra.mxu0 %v648
    %1050 = vmatprep.subr.bf16.mxu0 %v653
    %1051 = vmatpush1.bf16.msra.mxu0 %v652
    %1052 = vmatprep.subr.bf16.mxu0 %v657
    %1053 = vmatpush1.bf16.msra.mxu0 %v656
    %1054 = vmatprep.subr.bf16.mxu0 %v661
    %1055 = vmatpush1.bf16.msra.mxu0 %v660
    %1056 = vmatprep.subr.bf16.mxu0 %v665
    %1057 = vmatpush1.bf16.msra.mxu0 %v664
    %1058 = vmatprep.subr.bf16.mxu0 %v669
    %1059 = vmatpush1.bf16.msra.mxu0 %v668
    %1060 = vmatprep.subr.bf16.mxu0 %v673
    %1061 = vmatpush1.bf16.msra.mxu0 %v672
    %1062 = vmatprep.subr.bf16.mxu0 %v677
    %1063 = vmatpush1.bf16.msra.mxu0 %v676
    %1064 = vmatprep.subr.bf16.mxu0 0
    %1065 = vmatpush1.bf16.msra.mxu0 0
    %1066 = vmatprep.subr.bf16.mxu0 0
    %1067 = vmatpush1.bf16.msra.mxu0 0
    %1068 = vmatprep.subr.bf16.mxu0 0
    %1069 = vmatpush1.bf16.msra.mxu0 0
    %1070 = vmatprep.subr.bf16.mxu0 0
    %1071 = vmatpush1.bf16.msra.mxu0 0
    %1072 = vmatprep.subr.bf16.mxu0 0
    %1073 = vmatpush1.bf16.msra.mxu0 0
    %1074 = vmatprep.subr.bf16.mxu0 0
    %1075 = vmatpush1.bf16.msra.mxu0 0
    %1076 = vmatprep.subr.bf16.mxu0 0
    %1077 = vmatpush1.bf16.msra.mxu0 0
    %1078 = vmatprep.subr.bf16.mxu0 0
    %1079 = vmatpush1.bf16.msra.mxu0 0
    %1080 = vmatprep.mubr.bf16.mxu0 0
    %1081 = vmatmul.mubr.bf16.gmra.mrb[0].mxu0 %v1047
    %v1082 = vpop.f32.mrb[0].mxu0
    %v1083 = vadd.f32 0.0, %v1082
    %v1084 = vpop.f32.mrb[0].mxu0
    %v1085 = vadd.f32 0.0, %v1084
    %v1086 = vpop.f32.mrb[0].mxu0
    %v1087 = vpop.f32.mrb[0].mxu0
    %1088 = vdwg.mxu0
    %1089 = vmatprep.subr.bf16.mxu0 %v651
    %1090 = vmatpush1.bf16.msra.mxu0 %v650
    %1091 = vmatprep.subr.bf16.mxu0 %v655
    %1092 = vmatpush1.bf16.msra.mxu0 %v654
    %1093 = vmatprep.subr.bf16.mxu0 %v659
    %1094 = vmatpush1.bf16.msra.mxu0 %v658
    %1095 = vmatprep.subr.bf16.mxu0 %v663
    %1096 = vmatpush1.bf16.msra.mxu0 %v662
    %1097 = vmatprep.subr.bf16.mxu0 %v667
    %1098 = vmatpush1.bf16.msra.mxu0 %v666
    %1099 = vmatprep.subr.bf16.mxu0 %v671
    %1100 = vmatpush1.bf16.msra.mxu0 %v670
    %1101 = vmatprep.subr.bf16.mxu0 %v675
    %1102 = vmatpush1.bf16.msra.mxu0 %v674
    %1103 = vmatprep.subr.bf16.mxu0 %v679
    %1104 = vmatpush1.bf16.msra.mxu0 %v678
    %1105 = vmatprep.subr.bf16.mxu0 0
    %1106 = vmatpush1.bf16.msra.mxu0 0
    %1107 = vmatprep.subr.bf16.mxu0 0
    %1108 = vmatpush1.bf16.msra.mxu0 0
    %1109 = vmatprep.subr.bf16.mxu0 0
    %1110 = vmatpush1.bf16.msra.mxu0 0
    %1111 = vmatprep.subr.bf16.mxu0 0
    %1112 = vmatpush1.bf16.msra.mxu0 0
    %1113 = vmatprep.subr.bf16.mxu0 0
    %1114 = vmatpush1.bf16.msra.mxu0 0
    %1115 = vmatprep.subr.bf16.mxu0 0
    %1116 = vmatpush1.bf16.msra.mxu0 0
    %1117 = vmatprep.subr.bf16.mxu0 0
    %1118 = vmatpush1.bf16.msra.mxu0 0
    %1119 = vmatprep.subr.bf16.mxu0 0
    %1120 = vmatpush1.bf16.msra.mxu0 0
    %1121 = vmatprep.mubr.bf16.mxu0 0
    %1122 = vmatmul.mubr.bf16.gmra.mrb[0].mxu0 %v1047
    %v1123 = vpop.f32.mrb[0].mxu0
    %v1124 = vadd.f32 0.0, %v1123
    %v1125 = vpop.f32.mrb[0].mxu0
    %v1126 = vadd.f32 0.0, %v1125
    %v1127 = vpop.f32.mrb[0].mxu0
    %v1128 = vpop.f32.mrb[0].mxu0
    %1129 = vdwg.mxu0
    %v1130 = vadd.f32 %v1043, %v1083
    %v1131 = vadd.f32 %v1044, %v1085
    %v1132 = vadd.f32 %v1045, %v1124
    %v1133 = vadd.f32 %v1046, %v1126
    %v1134 = vmul.f32 %v1130, 0.5
    %v1135 = vtanh.pop %v1134
    %v1136 = vadd.f32 %v1135, 1.0
    %v1137 = vmul.f32 %v1136, 0.5
    %v1138 = vmul.f32 %v1131, 0.5
    %v1139 = vtanh.pop %v1138
    %v1140 = vadd.f32 %v1139, 1.0
    %v1141 = vmul.f32 %v1140, 0.5
    %v1142 = vtanh.pop %v1132
    %v1143 = vmul.f32 %v1133, 0.5
    %v1144 = vtanh.pop %v1143
    %v1145 = vadd.f32 %v1144, 1.0
    %v1146 = vmul.f32 %v1145, 0.5
    %v1147 = vmul.f32 %v1141, %v1037
    %v1148 = vmul.f32 %v1137, %v1142
    %v1149 = vadd.f32 %v1147, %v1148
    %v1150 = vtanh.pop %v1149
    %v1151 = vmul.f32 %v1146, %v1150
    %s1152 = smul.u32 4, 4
    %s1153 = smul.addr %s1152, 8
    %s1154 = scalar_lea.vmem [#allocation2], %s1153
    %v1155 = vld [vmem:[%s1154] sm:$0xff]
    %v1156 = vld [vmem:[%s1154 + $0x8] sm:$0xff]
    %v1157 = vld [vmem:[%s1154 + $0x10] sm:$0xff]
    %v1158 = vld [vmem:[%s1154 + $0x18] sm:$0xff]
    %v1159 = vpack.c.bf16 %v1151, %v1151
    %1160 = vmatprep.subr.bf16.mxu0 %v649
    %1161 = vmatpush1.bf16.msra.mxu0 %v648
    %1162 = vmatprep.subr.bf16.mxu0 %v653
    %1163 = vmatpush1.bf16.msra.mxu0 %v652
    %1164 = vmatprep.subr.bf16.mxu0 %v657
    %1165 = vmatpush1.bf16.msra.mxu0 %v656
    %1166 = vmatprep.subr.bf16.mxu0 %v661
    %1167 = vmatpush1.bf16.msra.mxu0 %v660
    %1168 = vmatprep.subr.bf16.mxu0 %v665
    %1169 = vmatpush1.bf16.msra.mxu0 %v664
    %1170 = vmatprep.subr.bf16.mxu0 %v669
    %1171 = vmatpush1.bf16.msra.mxu0 %v668
    %1172 = vmatprep.subr.bf16.mxu0 %v673
    %1173 = vmatpush1.bf16.msra.mxu0 %v672
    %1174 = vmatprep.subr.bf16.mxu0 %v677
    %1175 = vmatpush1.bf16.msra.mxu0 %v676
    %1176 = vmatprep.subr.bf16.mxu0 0
    %1177 = vmatpush1.bf16.msra.mxu0 0
    %1178 = vmatprep.subr.bf16.mxu0 0
    %1179 = vmatpush1.bf16.msra.mxu0 0
    %1180 = vmatprep.subr.bf16.mxu0 0
    %1181 = vmatpush1.bf16.msra.mxu0 0
    %1182 = vmatprep.subr.bf16.mxu0 0
    %1183 = vmatpush1.bf16.msra.mxu0 0
    %1184 = vmatprep.subr.bf16.mxu0 0
    %1185 = vmatpush1.bf16.msra.mxu0 0
    %1186 = vmatprep.subr.bf16.mxu0 0
    %1187 = vmatpush1.bf16.msra.mxu0 0
    %1188 = vmatprep.subr.bf16.mxu0 0
    %1189 = vmatpush1.bf16.msra.mxu0 0
    %1190 = vmatprep.subr.bf16.mxu0 0
    %1191 = vmatpush1.bf16.msra.mxu0 0
    %1192 = vmatprep.mubr.bf16.mxu0 0
    %1193 = vmatmul.mubr.bf16.gmra.mrb[0].mxu0 %v1159
    %v1194 = vpop.f32.mrb[0].mxu0
    %v1195 = vadd.f32 0.0, %v1194
    %v1196 = vpop.f32.mrb[0].mxu0
    %v1197 = vadd.f32 0.0, %v1196
    %v1198 = vpop.f32.mrb[0].mxu0
    %v1199 = vpop.f32.mrb[0].mxu0
    %1200 = vdwg.mxu0
    %1201 = vmatprep.subr.bf16.mxu0 %v651
    %1202 = vmatpush1.bf16.msra.mxu0 %v650
    %1203 = vmatprep.subr.bf16.mxu0 %v655
    %1204 = vmatpush1.bf16.msra.mxu0 %v654
    %1205 = vmatprep.subr.bf16.mxu0 %v659
    %1206 = vmatpush1.bf16.msra.mxu0 %v658
    %1207 = vmatprep.subr.bf16.mxu0 %v663
    %1208 = vmatpush1.bf16.msra.mxu0 %v662
    %1209 = vmatprep.subr.bf16.mxu0 %v667
    %1210 = vmatpush1.bf16.msra.mxu0 %v666
    %1211 = vmatprep.subr.bf16.mxu0 %v671
    %1212 = vmatpush1.bf16.msra.mxu0 %v670
    %1213 = vmatprep.subr.bf16.mxu0 %v675
    %1214 = vmatpush1.bf16.msra.mxu0 %v674
    %1215 = vmatprep.subr.bf16.mxu0 %v679
    %1216 = vmatpush1.bf16.msra.mxu0 %v678
    %1217 = vmatprep.subr.bf16.mxu0 0
    %1218 = vmatpush1.bf16.msra.mxu0 0
    %1219 = vmatprep.subr.bf16.mxu0 0
    %1220 = vmatpush1.bf16.msra.mxu0 0
    %1221 = vmatprep.subr.bf16.mxu0 0
    %1222 = vmatpush1.bf16.msra.mxu0 0
    %1223 = vmatprep.subr.bf16.mxu0 0
    %1224 = vmatpush1.bf16.msra.mxu0 0
    %1225 = vmatprep.subr.bf16.mxu0 0
    %1226 = vmatpush1.bf16.msra.mxu0 0
    %1227 = vmatprep.subr.bf16.mxu0 0
    %1228 = vmatpush1.bf16.msra.mxu0 0
    %1229 = vmatprep.subr.bf16.mxu0 0
    %1230 = vmatpush1.bf16.msra.mxu0 0
    %1231 = vmatprep.subr.bf16.mxu0 0
    %1232 = vmatpush1.bf16.msra.mxu0 0
    %1233 = vmatprep.mubr.bf16.mxu0 0
    %1234 = vmatmul.mubr.bf16.gmra.mrb[0].mxu0 %v1159
    %v1235 = vpop.f32.mrb[0].mxu0
    %v1236 = vadd.f32 0.0, %v1235
    %v1237 = vpop.f32.mrb[0].mxu0
    %v1238 = vadd.f32 0.0, %v1237
    %v1239 = vpop.f32.mrb[0].mxu0
    %v1240 = vpop.f32.mrb[0].mxu0
    %1241 = vdwg.mxu0
    %v1242 = vadd.f32 %v1155, %v1195
    %v1243 = vadd.f32 %v1156, %v1197
    %v1244 = vadd.f32 %v1157, %v1236
    %v1245 = vadd.f32 %v1158, %v1238
    %v1246 = vmul.f32 %v1242, 0.5
    %v1247 = vtanh.pop %v1246
    %v1248 = vadd.f32 %v1247, 1.0
    %v1249 = vmul.f32 %v1248, 0.5
    %v1250 = vmul.f32 %v1243, 0.5
    %v1251 = vtanh.pop %v1250
    %v1252 = vadd.f32 %v1251, 1.0
    %v1253 = vmul.f32 %v1252, 0.5
    %v1254 = vtanh.pop %v1244
    %v1255 = vmul.f32 %v1245, 0.5
    %v1256 = vtanh.pop %v1255
    %v1257 = vadd.f32 %v1256, 1.0
    %v1258 = vmul.f32 %v1257, 0.5
    %v1259 = vmul.f32 %v1253, %v1149
    %v1260 = vmul.f32 %v1249, %v1254
    %v1261 = vadd.f32 %v1259, %v1260
    %v1262 = vtanh.pop %v1261
    %v1263 = vmul.f32 %v1258, %v1262
    %s1264 = smul.u32 5, 4
    %s1265 = smul.addr %s1264, 8
    %s1266 = scalar_lea.vmem [#allocation2], %s1265
    %v1267 = vld [vmem:[%s1266] sm:$0xff]
    %v1268 = vld [vmem:[%s1266 + $0x8] sm:$0xff]
    %v1269 = vld [vmem:[%s1266 + $0x10] sm:$0xff]
    %v1270 = vld [vmem:[%s1266 + $0x18] sm:$0xff]
    %v1271 = vpack.c.bf16 %v1263, %v1263
    %1272 = vmatprep.subr.bf16.mxu0 %v649
    %1273 = vmatpush1.bf16.msra.mxu0 %v648
    %1274 = vmatprep.subr.bf16.mxu0 %v653
    %1275 = vmatpush1.bf16.msra.mxu0 %v652
    %1276 = vmatprep.subr.bf16.mxu0 %v657
    %1277 = vmatpush1.bf16.msra.mxu0 %v656
    %1278 = vmatprep.subr.bf16.mxu0 %v661
    %1279 = vmatpush1.bf16.msra.mxu0 %v660
    %1280 = vmatprep.subr.bf16.mxu0 %v665
    %1281 = vmatpush1.bf16.msra.mxu0 %v664
    %1282 = vmatprep.subr.bf16.mxu0 %v669
    %1283 = vmatpush1.bf16.msra.mxu0 %v668
    %1284 = vmatprep.subr.bf16.mxu0 %v673
    %1285 = vmatpush1.bf16.msra.mxu0 %v672
    %1286 = vmatprep.subr.bf16.mxu0 %v677
    %1287 = vmatpush1.bf16.msra.mxu0 %v676
    %1288 = vmatprep.subr.bf16.mxu0 0
    %1289 = vmatpush1.bf16.msra.mxu0 0
    %1290 = vmatprep.subr.bf16.mxu0 0
    %1291 = vmatpush1.bf16.msra.mxu0 0
    %1292 = vmatprep.subr.bf16.mxu0 0
    %1293 = vmatpush1.bf16.msra.mxu0 0
    %1294 = vmatprep.subr.bf16.mxu0 0
    %1295 = vmatpush1.bf16.msra.mxu0 0
    %1296 = vmatprep.subr.bf16.mxu0 0
    %1297 = vmatpush1.bf16.msra.mxu0 0
    %1298 = vmatprep.subr.bf16.mxu0 0
    %1299 = vmatpush1.bf16.msra.mxu0 0
    %1300 = vmatprep.subr.bf16.mxu0 0
    %1301 = vmatpush1.bf16.msra.mxu0 0
    %1302 = vmatprep.subr.bf16.mxu0 0
    %1303 = vmatpush1.bf16.msra.mxu0 0
    %1304 = vmatprep.mubr.bf16.mxu0 0
    %1305 = vmatmul.mubr.bf16.gmra.mrb[0].mxu0 %v1271
    %v1306 = vpop.f32.mrb[0].mxu0
    %v1307 = vadd.f32 0.0, %v1306
    %v1308 = vpop.f32.mrb[0].mxu0
    %v1309 = vadd.f32 0.0, %v1308
    %v1310 = vpop.f32.mrb[0].mxu0
    %v1311 = vpop.f32.mrb[0].mxu0
    %1312 = vdwg.mxu0
    %1313 = vmatprep.subr.bf16.mxu0 %v651
    %1314 = vmatpush1.bf16.msra.mxu0 %v650
    %1315 = vmatprep.subr.bf16.mxu0 %v655
    %1316 = vmatpush1.bf16.msra.mxu0 %v654
    %1317 = vmatprep.subr.bf16.mxu0 %v659
    %1318 = vmatpush1.bf16.msra.mxu0 %v658
    %1319 = vmatprep.subr.bf16.mxu0 %v663
    %1320 = vmatpush1.bf16.msra.mxu0 %v662
    %1321 = vmatprep.subr.bf16.mxu0 %v667
    %1322 = vmatpush1.bf16.msra.mxu0 %v666
    %1323 = vmatprep.subr.bf16.mxu0 %v671
    %1324 = vmatpush1.bf16.msra.mxu0 %v670
    %1325 = vmatprep.subr.bf16.mxu0 %v675
    %1326 = vmatpush1.bf16.msra.mxu0 %v674
    %1327 = vmatprep.subr.bf16.mxu0 %v679
    %1328 = vmatpush1.bf16.msra.mxu0 %v678
    %1329 = vmatprep.subr.bf16.mxu0 0
    %1330 = vmatpush1.bf16.msra.mxu0 0
    %1331 = vmatprep.subr.bf16.mxu0 0
    %1332 = vmatpush1.bf16.msra.mxu0 0
    %1333 = vmatprep.subr.bf16.mxu0 0
    %1334 = vmatpush1.bf16.msra.mxu0 0
    %1335 = vmatprep.subr.bf16.mxu0 0
    %1336 = vmatpush1.bf16.msra.mxu0 0
    %1337 = vmatprep.subr.bf16.mxu0 0
    %1338 = vmatpush1.bf16.msra.mxu0 0
    %1339 = vmatprep.subr.bf16.mxu0 0
    %1340 = vmatpush1.bf16.msra.mxu0 0
    %1341 = vmatprep.subr.bf16.mxu0 0
    %1342 = vmatpush1.bf16.msra.mxu0 0
    %1343 = vmatprep.subr.bf16.mxu0 0
    %1344 = vmatpush1.bf16.msra.mxu0 0
    %1345 = vmatprep.mubr.bf16.mxu0 0
    %1346 = vmatmul.mubr.bf16.gmra.mrb[0].mxu0 %v1271
    %v1347 = vpop.f32.mrb[0].mxu0
    %v1348 = vadd.f32 0.0, %v1347
    %v1349 = vpop.f32.mrb[0].mxu0
    %v1350 = vadd.f32 0.0, %v1349
    %v1351 = vpop.f32.mrb[0].mxu0
    %v1352 = vpop.f32.mrb[0].mxu0
    %1353 = vdwg.mxu0
    %v1354 = vadd.f32 %v1267, %v1307
    %v1355 = vadd.f32 %v1268, %v1309
    %v1356 = vadd.f32 %v1269, %v1348
    %v1357 = vadd.f32 %v1270, %v1350
    %v1358 = vmul.f32 %v1354, 0.5
    %v1359 = vtanh.pop %v1358
    %v1360 = vadd.f32 %v1359, 1.0
    %v1361 = vmul.f32 %v1360, 0.5
    %v1362 = vmul.f32 %v1355, 0.5
    %v1363 = vtanh.pop %v1362
    %v1364 = vadd.f32 %v1363, 1.0
    %v1365 = vmul.f32 %v1364, 0.5
    %v1366 = vtanh.pop %v1356
    %v1367 = vmul.f32 %v1357, 0.5
    %v1368 = vtanh.pop %v1367
    %v1369 = vadd.f32 %v1368, 1.0
    %v1370 = vmul.f32 %v1369, 0.5
    %v1371 = vmul.f32 %v1365, %v1261
    %v1372 = vmul.f32 %v1361, %v1366
    %v1373 = vadd.f32 %v1371, %v1372
    %v1374 = vtanh.pop %v1373
    %v1375 = vmul.f32 %v1370, %v1374
    %s1376 = smul.u32 6, 4
    %s1377 = smul.addr %s1376, 8
    %s1378 = scalar_lea.vmem [#allocation2], %s1377
    %v1379 = vld [vmem:[%s1378] sm:$0xff]
    %v1380 = vld [vmem:[%s1378 + $0x8] sm:$0xff]
    %v1381 = vld [vmem:[%s1378 + $0x10] sm:$0xff]
    %v1382 = vld [vmem:[%s1378 + $0x18] sm:$0xff]
    %v1383 = vpack.c.bf16 %v1375, %v1375
    %1384 = vmatprep.subr.bf16.mxu0 %v649
    %1385 = vmatpush1.bf16.msra.mxu0 %v648
    %1386 = vmatprep.subr.bf16.mxu0 %v653
    %1387 = vmatpush1.bf16.msra.mxu0 %v652
    %1388 = vmatprep.subr.bf16.mxu0 %v657
    %1389 = vmatpush1.bf16.msra.mxu0 %v656
    %1390 = vmatprep.subr.bf16.mxu0 %v661
    %1391 = vmatpush1.bf16.msra.mxu0 %v660
    %1392 = vmatprep.subr.bf16.mxu0 %v665
    %1393 = vmatpush1.bf16.msra.mxu0 %v664
    %1394 = vmatprep.subr.bf16.mxu0 %v669
    %1395 = vmatpush1.bf16.msra.mxu0 %v668
    %1396 = vmatprep.subr.bf16.mxu0 %v673
    %1397 = vmatpush1.bf16.msra.mxu0 %v672
    %1398 = vmatprep.subr.bf16.mxu0 %v677
    %1399 = vmatpush1.bf16.msra.mxu0 %v676
    %1400 = vmatprep.subr.bf16.mxu0 0
    %1401 = vmatpush1.bf16.msra.mxu0 0
    %1402 = vmatprep.subr.bf16.mxu0 0
    %1403 = vmatpush1.bf16.msra.mxu0 0
    %1404 = vmatprep.subr.bf16.mxu0 0
    %1405 = vmatpush1.bf16.msra.mxu0 0
    %1406 = vmatprep.subr.bf16.mxu0 0
    %1407 = vmatpush1.bf16.msra.mxu0 0
    %1408 = vmatprep.subr.bf16.mxu0 0
    %1409 = vmatpush1.bf16.msra.mxu0 0
    %1410 = vmatprep.subr.bf16.mxu0 0
    %1411 = vmatpush1.bf16.msra.mxu0 0
    %1412 = vmatprep.subr.bf16.mxu0 0
    %1413 = vmatpush1.bf16.msra.mxu0 0
    %1414 = vmatprep.subr.bf16.mxu0 0
    %1415 = vmatpush1.bf16.msra.mxu0 0
    %1416 = vmatprep.mubr.bf16.mxu0 0
    %1417 = vmatmul.mubr.bf16.gmra.mrb[0].mxu0 %v1383
    %v1418 = vpop.f32.mrb[0].mxu0
    %v1419 = vadd.f32 0.0, %v1418
    %v1420 = vpop.f32.mrb[0].mxu0
    %v1421 = vadd.f32 0.0, %v1420
    %v1422 = vpop.f32.mrb[0].mxu0
    %v1423 = vpop.f32.mrb[0].mxu0
    %1424 = vdwg.mxu0
    %1425 = vmatprep.subr.bf16.mxu0 %v651
    %1426 = vmatpush1.bf16.msra.mxu0 %v650
    %1427 = vmatprep.subr.bf16.mxu0 %v655
    %1428 = vmatpush1.bf16.msra.mxu0 %v654
    %1429 = vmatprep.subr.bf16.mxu0 %v659
    %1430 = vmatpush1.bf16.msra.mxu0 %v658
    %1431 = vmatprep.subr.bf16.mxu0 %v663
    %1432 = vmatpush1.bf16.msra.mxu0 %v662
    %1433 = vmatprep.subr.bf16.mxu0 %v667
    %1434 = vmatpush1.bf16.msra.mxu0 %v666
    %1435 = vmatprep.subr.bf16.mxu0 %v671
    %1436 = vmatpush1.bf16.msra.mxu0 %v670
    %1437 = vmatprep.subr.bf16.mxu0 %v675
    %1438 = vmatpush1.bf16.msra.mxu0 %v674
    %1439 = vmatprep.subr.bf16.mxu0 %v679
    %1440 = vmatpush1.bf16.msra.mxu0 %v678
    %1441 = vmatprep.subr.bf16.mxu0 0
    %1442 = vmatpush1.bf16.msra.mxu0 0
    %1443 = vmatprep.subr.bf16.mxu0 0
    %1444 = vmatpush1.bf16.msra.mxu0 0
    %1445 = vmatprep.subr.bf16.mxu0 0
    %1446 = vmatpush1.bf16.msra.mxu0 0
    %1447 = vmatprep.subr.bf16.mxu0 0
    %1448 = vmatpush1.bf16.msra.mxu0 0
    %1449 = vmatprep.subr.bf16.mxu0 0
    %1450 = vmatpush1.bf16.msra.mxu0 0
    %1451 = vmatprep.subr.bf16.mxu0 0
    %1452 = vmatpush1.bf16.msra.mxu0 0
    %1453 = vmatprep.subr.bf16.mxu0 0
    %1454 = vmatpush1.bf16.msra.mxu0 0
    %1455 = vmatprep.subr.bf16.mxu0 0
    %1456 = vmatpush1.bf16.msra.mxu0 0
    %1457 = vmatprep.mubr.bf16.mxu0 0
    %1458 = vmatmul.mubr.bf16.gmra.mrb[0].mxu0 %v1383
    %v1459 = vpop.f32.mrb[0].mxu0
    %v1460 = vadd.f32 0.0, %v1459
    %v1461 = vpop.f32.mrb[0].mxu0
    %v1462 = vadd.f32 0.0, %v1461
    %v1463 = vpop.f32.mrb[0].mxu0
    %v1464 = vpop.f32.mrb[0].mxu0
    %1465 = vdwg.mxu0
    %v1466 = vadd.f32 %v1379, %v1419
    %v1467 = vadd.f32 %v1380, %v1421
    %v1468 = vadd.f32 %v1381, %v1460
    %v1469 = vadd.f32 %v1382, %v1462
    %v1470 = vmul.f32 %v1466, 0.5
    %v1471 = vtanh.pop %v1470
    %v1472 = vadd.f32 %v1471, 1.0
    %v1473 = vmul.f32 %v1472, 0.5
    %v1474 = vmul.f32 %v1467, 0.5
    %v1475 = vtanh.pop %v1474
    %v1476 = vadd.f32 %v1475, 1.0
    %v1477 = vmul.f32 %v1476, 0.5
    %v1478 = vtanh.pop %v1468
    %v1479 = vmul.f32 %v1469, 0.5
    %v1480 = vtanh.pop %v1479
    %v1481 = vadd.f32 %v1480, 1.0
    %v1482 = vmul.f32 %v1481, 0.5
    %v1483 = vmul.f32 %v1477, %v1373
    %v1484 = vmul.f32 %v1473, %v1478
    %v1485 = vadd.f32 %v1483, %v1484
    %v1486 = vtanh.pop %v1485
    %v1487 = vmul.f32 %v1482, %v1486
    %s1488 = smul.u32 7, 4
    %s1489 = smul.addr %s1488, 8
    %s1490 = scalar_lea.vmem [#allocation2], %s1489
    %v1491 = vld [vmem:[%s1490] sm:$0xff]
    %v1492 = vld [vmem:[%s1490 + $0x8] sm:$0xff]
    %v1493 = vld [vmem:[%s1490 + $0x10] sm:$0xff]
    %v1494 = vld [vmem:[%s1490 + $0x18] sm:$0xff]
    %v1495 = vpack.c.bf16 %v1487, %v1487
    %1496 = vmatprep.subr.bf16.mxu0 %v649
    %1497 = vmatpush1.bf16.msra.mxu0 %v648
    %1498 = vmatprep.subr.bf16.mxu0 %v653
    %1499 = vmatpush1.bf16.msra.mxu0 %v652
    %1500 = vmatprep.subr.bf16.mxu0 %v657
    %1501 = vmatpush1.bf16.msra.mxu0 %v656
    %1502 = vmatprep.subr.bf16.mxu0 %v661
    %1503 = vmatpush1.bf16.msra.mxu0 %v660
    %1504 = vmatprep.subr.bf16.mxu0 %v665
    %1505 = vmatpush1.bf16.msra.mxu0 %v664
    %1506 = vmatprep.subr.bf16.mxu0 %v669
    %1507 = vmatpush1.bf16.msra.mxu0 %v668
    %1508 = vmatprep.subr.bf16.mxu0 %v673
    %1509 = vmatpush1.bf16.msra.mxu0 %v672
    %1510 = vmatprep.subr.bf16.mxu0 %v677
    %1511 = vmatpush1.bf16.msra.mxu0 %v676
    %1512 = vmatprep.subr.bf16.mxu0 0
    %1513 = vmatpush1.bf16.msra.mxu0 0
    %1514 = vmatprep.subr.bf16.mxu0 0
    %1515 = vmatpush1.bf16.msra.mxu0 0
    %1516 = vmatprep.subr.bf16.mxu0 0
    %1517 = vmatpush1.bf16.msra.mxu0 0
    %1518 = vmatprep.subr.bf16.mxu0 0
    %1519 = vmatpush1.bf16.msra.mxu0 0
    %1520 = vmatprep.subr.bf16.mxu0 0
    %1521 = vmatpush1.bf16.msra.mxu0 0
    %1522 = vmatprep.subr.bf16.mxu0 0
    %1523 = vmatpush1.bf16.msra.mxu0 0
    %1524 = vmatprep.subr.bf16.mxu0 0
    %1525 = vmatpush1.bf16.msra.mxu0 0
    %1526 = vmatprep.subr.bf16.mxu0 0
    %1527 = vmatpush1.bf16.msra.mxu0 0
    %1528 = vmatprep.mubr.bf16.mxu0 0
    %1529 = vmatmul.mubr.bf16.gmra.mrb[0].mxu0 %v1495
    %v1530 = vpop.f32.mrb[0].mxu0
    %v1531 = vadd.f32 0.0, %v1530
    %v1532 = vpop.f32.mrb[0].mxu0
    %v1533 = vadd.f32 0.0, %v1532
    %v1534 = vpop.f32.mrb[0].mxu0
    %v1535 = vpop.f32.mrb[0].mxu0
    %1536 = vdwg.mxu0
    %1537 = vmatprep.subr.bf16.mxu0 %v651
    %1538 = vmatpush1.bf16.msra.mxu0 %v650
    %1539 = vmatprep.subr.bf16.mxu0 %v655
    %1540 = vmatpush1.bf16.msra.mxu0 %v654
    %1541 = vmatprep.subr.bf16.mxu0 %v659
    %1542 = vmatpush1.bf16.msra.mxu0 %v658
    %1543 = vmatprep.subr.bf16.mxu0 %v663
    %1544 = vmatpush1.bf16.msra.mxu0 %v662
    %1545 = vmatprep.subr.bf16.mxu0 %v667
    %1546 = vmatpush1.bf16.msra.mxu0 %v666
    %1547 = vmatprep.subr.bf16.mxu0 %v671
    %1548 = vmatpush1.bf16.msra.mxu0 %v670
    %1549 = vmatprep.subr.bf16.mxu0 %v675
    %1550 = vmatpush1.bf16.msra.mxu0 %v674
    %1551 = vmatprep.subr.bf16.mxu0 %v679
    %1552 = vmatpush1.bf16.msra.mxu0 %v678
    %1553 = vmatprep.subr.bf16.mxu0 0
    %1554 = vmatpush1.bf16.msra.mxu0 0
    %1555 = vmatprep.subr.bf16.mxu0 0
    %1556 = vmatpush1.bf16.msra.mxu0 0
    %1557 = vmatprep.subr.bf16.mxu0 0
    %1558 = vmatpush1.bf16.msra.mxu0 0
    %1559 = vmatprep.subr.bf16.mxu0 0
    %1560 = vmatpush1.bf16.msra.mxu0 0
    %1561 = vmatprep.subr.bf16.mxu0 0
    %1562 = vmatpush1.bf16.msra.mxu0 0
    %1563 = vmatprep.subr.bf16.mxu0 0
    %1564 = vmatpush1.bf16.msra.mxu0 0
    %1565 = vmatprep.subr.bf16.mxu0 0
    %1566 = vmatpush1.bf16.msra.mxu0 0
    %1567 = vmatprep.subr.bf16.mxu0 0
    %1568 = vmatpush1.bf16.msra.mxu0 0
    %1569 = vmatprep.mubr.bf16.mxu0 0
    %1570 = vmatmul.mubr.bf16.gmra.mrb[0].mxu0 %v1495
    %v1571 = vpop.f32.mrb[0].mxu0
    %v1572 = vadd.f32 0.0, %v1571
    %v1573 = vpop.f32.mrb[0].mxu0
    %v1574 = vadd.f32 0.0, %v1573
    %v1575 = vpop.f32.mrb[0].mxu0
    %v1576 = vpop.f32.mrb[0].mxu0
    %1577 = vdwg.mxu0
    %v1578 = vadd.f32 %v1491, %v1531
    %v1579 = vadd.f32 %v1492, %v1533
    %v1580 = vadd.f32 %v1493, %v1572
    %v1581 = vadd.f32 %v1494, %v1574
    %v1582 = vmul.f32 %v1578, 0.5
    %v1583 = vtanh.pop %v1582
    %v1584 = vadd.f32 %v1583, 1.0
    %v1585 = vmul.f32 %v1584, 0.5
    %v1586 = vmul.f32 %v1579, 0.5
    %v1587 = vtanh.pop %v1586
    %v1588 = vadd.f32 %v1587, 1.0
    %v1589 = vmul.f32 %v1588, 0.5
    %v1590 = vtanh.pop %v1580
    %v1591 = vmul.f32 %v1581, 0.5
    %v1592 = vtanh.pop %v1591
    %v1593 = vadd.f32 %v1592, 1.0
    %v1594 = vmul.f32 %v1593, 0.5
    %v1595 = vmul.f32 %v1589, %v1485
    %v1596 = vmul.f32 %v1585, %v1590
    %v1597 = vadd.f32 %v1595, %v1596
    %v1598 = vtanh.pop %v1597
    %v1599 = vmul.f32 %v1594, %v1598
    %1600 = vst [vmem:[#allocation3] sm:$0xff] %v1599
    %1601 = vst [vmem:[#allocation4] sm:$0xff] %v1597
    // Predicated region
    $region46: #{tpu_custom_call.1} parent=1 // pred_check
      %p1602 = pneg %p80
    $region47: #{tpu_custom_call.1} parent=1 // pred_check_branch
      %1604 = sbr.rel (%p1602) target = $region49
    $region48: #{tpu_custom_call.1} parent=1 // pred_region
      %v1605 = vpack.c.bf16 %v1599, %v1599
      %v1606 = vld [vmem:[#allocation11] sm:$0xf]
      %v1607 = vld [vmem:[#allocation11 + $0x4] sm:$0xf]
      %v1608 = vld [vmem:[#allocation11 + $0x8] sm:$0xf]
      %v1609 = vld [vmem:[#allocation11 + $0xc] sm:$0xf]
      %v1610 = vld [vmem:[#allocation11 + $0x10] sm:$0xf]
      %v1611 = vld [vmem:[#allocation11 + $0x14] sm:$0xf]
      %v1612 = vld [vmem:[#allocation11 + $0x18] sm:$0xf]
      %v1613 = vld [vmem:[#allocation11 + $0x1c] sm:$0xf]
      %v1614 = vld [vmem:[#allocation11 + $0x20] sm:$0xf]
      %v1615 = vld [vmem:[#allocation11 + $0x24] sm:$0xf]
      %v1616 = vld [vmem:[#allocation11 + $0x28] sm:$0xf]
      %v1617 = vld [vmem:[#allocation11 + $0x2c] sm:$0xf]
      %v1618 = vld [vmem:[#allocation11 + $0x30] sm:$0xf]
      %v1619 = vld [vmem:[#allocation11 + $0x34] sm:$0xf]
      %v1620 = vld [vmem:[#allocation11 + $0x38] sm:$0xf]
      %v1621 = vld [vmem:[#allocation11 + $0x3c] sm:$0xf]
      %v1622 = vld [vmem:[%s5] sm:$0x1]
      %v1624 = vlaneseq
      %v1625 = vshrl.u32 %v1624, 7
      %v1626 = vsub.s32 0, %v1625
      %v1627 = vrot.slane %v1622, %v1626
      %v1645 = vunpack.c.l.b16 %v1606
      %v1646 = vunpack.c.l.b16 %v1607
      %v1647 = vunpack.c.l.b16 %v1608
      %v1648 = vunpack.c.l.b16 %v1609
      %v1649 = vunpack.c.l.b16 %v1610
      %v1650 = vunpack.c.l.b16 %v1611
      %v1651 = vunpack.c.l.b16 %v1612
      %v1652 = vunpack.c.l.b16 %v1613
      %v1653 = vunpack.c.l.b16 %v1614
      %v1654 = vunpack.c.l.b16 %v1615
      %v1655 = vunpack.c.l.b16 %v1616
      %v1656 = vunpack.c.l.b16 %v1617
      %v1657 = vunpack.c.l.b16 %v1618
      %v1658 = vunpack.c.l.b16 %v1619
      %v1659 = vunpack.c.l.b16 %v1620
      %v1660 = vunpack.c.l.b16 %v1621
      %v1661 = vpack.c.b16 %v1646, %v1645
      %v1662 = vpack.c.b16 %v1648, %v1647
      %v1663 = vpack.c.b16 %v1650, %v1649
      %v1664 = vpack.c.b16 %v1652, %v1651
      %v1665 = vpack.c.b16 %v1654, %v1653
      %v1666 = vpack.c.b16 %v1656, %v1655
      %v1667 = vpack.c.b16 %v1658, %v1657
      %v1668 = vpack.c.b16 %v1660, %v1659
      %1677 = vmatprep.subr.bf16.mxu0 0
      %1678 = vmatpush1.bf16.msra.mxu0 %v1661
      %1679 = vmatprep.subr.bf16.mxu0 0
      %1680 = vmatpush1.bf16.msra.mxu0 %v1662
      %1681 = vmatprep.subr.bf16.mxu0 0
      %1682 = vmatpush1.bf16.msra.mxu0 %v1663
      %1683 = vmatprep.subr.bf16.mxu0 0
      %1684 = vmatpush1.bf16.msra.mxu0 %v1664
      %1685 = vmatprep.subr.bf16.mxu0 0
      %1686 = vmatpush1.bf16.msra.mxu0 %v1665
      %1687 = vmatprep.subr.bf16.mxu0 0
      %1688 = vmatpush1.bf16.msra.mxu0 %v1666
      %1689 = vmatprep.subr.bf16.mxu0 0
      %1690 = vmatpush1.bf16.msra.mxu0 %v1667
      %1691 = vmatprep.subr.bf16.mxu0 0
      %1692 = vmatpush1.bf16.msra.mxu0 %v1668
      %1693 = vmatprep.subr.bf16.mxu0 0
      %1694 = vmatpush1.bf16.msra.mxu0 0
      %1695 = vmatprep.subr.bf16.mxu0 0
      %1696 = vmatpush1.bf16.msra.mxu0 0
      %1697 = vmatprep.subr.bf16.mxu0 0
      %1698 = vmatpush1.bf16.msra.mxu0 0
      %1699 = vmatprep.subr.bf16.mxu0 0
      %1700 = vmatpush1.bf16.msra.mxu0 0
      %1701 = vmatprep.subr.bf16.mxu0 0
      %1702 = vmatpush1.bf16.msra.mxu0 0
      %1703 = vmatprep.subr.bf16.mxu0 0
      %1704 = vmatpush1.bf16.msra.mxu0 0
      %1705 = vmatprep.subr.bf16.mxu0 0
      %1706 = vmatpush1.bf16.msra.mxu0 0
      %1707 = vmatprep.subr.bf16.mxu0 0
      %1708 = vmatpush1.bf16.msra.mxu0 0
      %1709 = vmatprep.mubr.bf16.mxu0 0
      %1710 = vmatmul.mubr.bf16.gmra.mrb[0].mxu0 %v1605
      %v1711 = vpop.f32.mrb[0].mxu0
      %v1712 = vadd.f32 %v1627, %v1711
      %v1713 = vpop.f32.mrb[0].mxu0
      %v1714 = vpop.f32.mrb[0].mxu0
      %v1715 = vpop.f32.mrb[0].mxu0
      %1716 = vdwg.mxu0
      %v1717 = vmul.f32 %v1712, 0.5
      %v1718 = vtanh.pop %v1717
      %v1719 = vadd.f32 %v1718, 1.0
      %v1720 = vmul.f32 %v1719, 0.5
      %1721 = vst [vmem:[#allocation13] sm:$0xff] %v1720
    $region49: #{tpu_custom_call.1} parent=1 // pred_fallthru
      _
    // Predicated region
    $region50: #{tpu_custom_call.1} parent=1 // pred_check
      _
    $region51: #{tpu_custom_call.1} parent=1 // pred_check_branch
      %1723 = sbr.rel (0) target = $region53
    $region52: #{tpu_custom_call.1} parent=1 // pred_region
      %s1725 = ssub.s32 128, 128
      %1726 = vsyncadd [#allocation7], %s1725
      %s1728 = sshll.u32 [#allocation13], 4
      %s1729 = int_to_ptr.vmem [resolvable:$true] %s1728
      %1731 = dma.vmem_to_hbm [thread:$0]  %s1729, 128, %s6, [#allocation7]
    $region53: #{tpu_custom_call.1} parent=1 // pred_fallthru
      _
    // Predicated region
    $region54: #{tpu_custom_call.1} parent=1 // pred_check
      _
    $region55: #{tpu_custom_call.1} parent=1 // pred_check_branch
      %1733 = sbr.rel (0) target = $region57
    $region56: #{tpu_custom_call.1} parent=1 // pred_region
      %1734 = dma.done [#allocation7], 128
    $region57: #{tpu_custom_call.1} parent=1 // pred_fallthru
      _
    %1735 = vsyncpa [#allocation6], 1
    %1736 = vsyncpa [#allocation9], 1
    %1737 = vsyncpa [#allocation12], 1
    %1738 = vsyncpa [#allocation7], 1

</llo_original>
